<compile_context>
chip_gen: v6e
topology: v6e:2x2x1
jax: 0.10.0
libtpu: 0.0.40
codegen_flags: <defaults>
</compile_context>

<pallas_src>
import functools

import jax
import jax.numpy as jnp
from jax.experimental import pallas as pl
from jax.experimental.pallas import tpu as pltpu

NUM_BLOCKS = 5


def _round_up(x, m):
    return (x + m - 1) // m * m


# ----------------------------------------------------------------------------
# Raw parameter construction (faithful port of pytorch-flows MADE masks +
# BatchNormFlow buffers, deterministic synthetic init).
# ----------------------------------------------------------------------------
def _get_mask(in_features, out_features, in_flow_features, mask_type=None):
    """Port of pytorch-flows get_mask(); returns (out_features, in_features)."""
    if mask_type == 'input':
        in_degrees = jnp.arange(in_features) % in_flow_features
    else:
        in_degrees = jnp.arange(in_features) % (in_flow_features - 1)
    if mask_type == 'output':
        out_degrees = jnp.arange(out_features) % in_flow_features - 1
    else:
        out_degrees = jnp.arange(out_features) % (in_flow_features - 1)
    return (out_degrees[:, None] >= in_degrees[None, :]).astype(jnp.float32)


def init_raw_flow_params(key, continuous_size, latent_size, num_blocks=NUM_BLOCKS):
    D, H = continuous_size, latent_size
    ks = jax.random.split(key, num_blocks * 9)

    in_mask = _get_mask(D, H, D, mask_type='input')        # (H, D)
    hid_mask = _get_mask(H, H, D)                          # (H, H)
    out_mask = _get_mask(H, 2 * D, D, mask_type='output')  # (2D, H)

    def nrm(k, shape, scale):
        return scale * jax.random.normal(k, shape, jnp.float32)

    raw = {k: [] for k in ['W1', 'b1', 'W2', 'b2', 'W3', 'b3',
                           'log_gamma', 'beta', 'r_mean', 'r_var']}
    for blk in range(num_blocks):
        k = ks[blk * 9:(blk + 1) * 9]
        # PyTorch MaskedLinear weights are (out, in); pre-apply the autoregressive mask.
        raw['W1'].append(nrm(k[0], (H, D), 0.2) * in_mask)
        raw['W2'].append(nrm(k[1], (H, H), 0.2) * hid_mask)
        raw['W3'].append(nrm(k[2], (2 * D, H), 0.2) * out_mask)
        raw['b1'].append(nrm(k[3], (H,), 0.05))
        raw['b2'].append(nrm(k[4], (H,), 0.05))
        raw['b3'].append(nrm(k[5], (2 * D,), 0.05))
        # TODO(synk): training-mode BatchNormFlow (per-batch statistics + running buffer
        # updates) is stateful across calls; eval-mode running stats are used here.
        raw['log_gamma'].append(nrm(k[6], (D,), 0.05))
        raw['beta'].append(nrm(k[7], (D,), 0.05))
        raw['r_mean'].append(nrm(k[8], (D,), 0.05))
        raw['r_var'].append(jnp.ones((D,), jnp.float32))
    return {k: jnp.stack(v) for k, v in raw.items()}


# ----------------------------------------------------------------------------
# Kernel-ready parameter packing:
#   * fold eval-mode BatchNormFlow into scale/shift,
#   * fold the Reverse() layers into odd-parity block parameters,
#   * pre-split W3/b3 into m/a halves,
#   * precompute the constant logdet term,
#   * cast MXU operands (weights) to bf16.
# ----------------------------------------------------------------------------
def pack_kernel_params(raw, matmul_dtype=jnp.bfloat16):
    W1, W2, W3 = raw['W1'], raw['W2'], raw['W3']
    b1, b2, b3 = raw['b1'], raw['b2'], raw['b3']
    NB, _, D = W1.shape

    scale = jnp.exp(raw['log_gamma']) / jnp.sqrt(raw['r_var'])      # (NB, D)
    shift = raw['beta'] - raw['r_mean'] * scale                     # (NB, D)
    ld_const = jnp.sum(raw['log_gamma'] - 0.5 * jnp.log(raw['r_var']))  # scalar

    W3m, W3a = W3[:, :D, :], W3[:, D:, :]
    b3m, b3a = b3[:, :D], b3[:, D:]

    # Fold Reverse(): odd-parity blocks see a feature-reversed input and must emit
    # feature-reversed m/a and BN parameters; one final flip is done in the wrapper.
    w1_f, w3m_f, w3a_f, b3m_f, b3a_f, s_f, t_f = [], [], [], [], [], [], []
    for blk in range(NB):
        if blk % 2 == 1:
            w1_f.append(W1[blk, :, ::-1])
            w3m_f.append(W3m[blk, ::-1, :])
            w3a_f.append(W3a[blk, ::-1, :])
            b3m_f.append(b3m[blk, ::-1])
            b3a_f.append(b3a[blk, ::-1])
            s_f.append(scale[blk, ::-1])
            t_f.append(shift[blk, ::-1])
        else:
            w1_f.append(W1[blk])
            w3m_f.append(W3m[blk])
            w3a_f.append(W3a[blk])
            b3m_f.append(b3m[blk])
            b3a_f.append(b3a[blk])
            s_f.append(scale[blk])
            t_f.append(shift[blk])

    return dict(
        w1=jnp.stack(w1_f).astype(matmul_dtype),          # (NB, H, D)
        b1=b1[:, :, None],                                # (NB, H, 1) f32
        w2=W2.astype(matmul_dtype),                       # (NB, H, H)
        b2=b2[:, :, None],                                # (NB, H, 1)
        w3m=jnp.stack(w3m_f).astype(matmul_dtype),        # (NB, D, H)
        b3m=jnp.stack(b3m_f)[:, :, None],                 # (NB, D, 1)
        w3a=jnp.stack(w3a_f).astype(matmul_dtype),        # (NB, D, H)
        b3a=jnp.stack(b3a_f)[:, :, None],                 # (NB, D, 1)
        bn_scale=jnp.stack(s_f)[:, :, None],              # (NB, D, 1)
        bn_shift=jnp.stack(t_f)[:, :, None],              # (NB, D, 1)
        ld_const=ld_const,                                # scalar
        num_blocks=NB,                                    # python int
    )


# ----------------------------------------------------------------------------
# Pallas kernel: full MAF flow (5 blocks) on one lane-tile of the transposed input.
# x is carried as (D, tile_rows): features on sublanes, rows on lanes.
# ----------------------------------------------------------------------------
def _flow_kernel(x_ref, w1_ref, b1_ref, w2_ref, b2_ref,
                 w3m_ref, b3m_ref, w3a_ref, b3a_ref, bns_ref, bnb_ref,
                 flow_ref, ld_ref, *, num_blocks, matmul_dtype):
    x = x_ref[...]                                     # (D, TN) f32
    ld = jnp.zeros((1, x.shape[1]), jnp.float32)       # per-row logdet (lane-dense)

    for blk in range(num_blocks):                      # fully unrolled (5 blocks)
        # --- MADE (mode='direct'): h = tanh(W1 x + b1); h = tanh(W2 h + b2);
        #     m = W3m h + b3m; a = W3a h + b3a      (W's are bf16, accum f32)
        xin = x.astype(matmul_dtype)
        h = jnp.dot(w1_ref[blk], xin, preferred_element_type=jnp.float32) + b1_ref[blk]
        h = jnp.tanh(h).astype(matmul_dtype)
        h = jnp.dot(w2_ref[blk], h, preferred_element_type=jnp.float32) + b2_ref[blk]
        h = jnp.tanh(h).astype(matmul_dtype)
        m = jnp.dot(w3m_ref[blk], h, preferred_element_type=jnp.float32) + b3m_ref[blk]
        a = jnp.dot(w3a_ref[blk], h, preferred_element_type=jnp.float32) + b3a_ref[blk]

        # --- coupling: u = (x - m) * exp(-a); logdet -= sum(a)
        x = (x - m) * jnp.exp(-a)
        ld = ld - jnp.sum(a, axis=0, keepdims=True)

        # --- BatchNormFlow (eval mode) folded to scale/shift; Reverse() folded into
        #     odd-block parameters (constant bn logdet term added in the wrapper).
        x = x * bns_ref[blk] + bnb_ref[blk]

    flow_ref[...] = x
    ld_ref[...] = ld


# ----------------------------------------------------------------------------
# Wrapper matching FlowReparameterizer.forward semantics.
# ----------------------------------------------------------------------------
def flow_reparameterize(logits, params, *, lane_tile=512):
    if logits.ndim == 3:
        _, num_reads, d = logits.shape
    elif logits.ndim == 2:
        _, d = logits.shape
        num_reads = None
    else:
        raise ValueError("logits must be 2D or 3D")

    x = logits.reshape(-1, d).astype(jnp.float32)
    n = x.shape[0]

    # Layout plumbing (plain XLA): rows -> lanes, features -> sublanes.
    xt = x.T                                           # (d, n)

    nb = params['num_blocks']
    mdt = params['w1'].dtype

    # Lane tile: multiple of 128; prefer >=2 grid steps when there is enough work so the
    # pipeline double-buffers and v7x's two TensorCores both get tiles ("parallel" axis).
    tn = _round_up(min(lane_tile, _round_up(n, 128)), 128)
    if n > 128 and pl.cdiv(n, tn) < 2:
        tn = _round_up(pl.cdiv(n, 2), 128)
    grid = (pl.cdiv(n, tn),)

    def resident(arr):
        nd = arr.ndim
        return pl.BlockSpec(arr.shape, lambda i, _nd=nd: (0,) * _nd)

    kernel = functools.partial(_flow_kernel, num_blocks=nb, matmul_dtype=mdt)

    flow_t, ld_t = pl.pallas_call(
        kernel,
        out_shape=(jax.ShapeDtypeStruct((d, n), jnp.float32),
                   jax.ShapeDtypeStruct((1, n), jnp.float32)),
        grid=grid,
        in_specs=[
            pl.BlockSpec((d, tn), lambda i: (0, i)),   # x tile (rows on lanes)
            resident(params['w1']), resident(params['b1']),
            resident(params['w2']), resident(params['b2']),
            resident(params['w3m']), resident(params['b3m']),
            resident(params['w3a']), resident(params['b3a']),
            resident(params['bn_scale']), resident(params['bn_shift']),
        ],
        out_specs=(pl.BlockSpec((d, tn), lambda i: (0, i)),
                   pl.BlockSpec((1, tn), lambda i: (0, i))),
        compiler_params=pltpu.CompilerParams(dimension_semantics=("parallel",)),
    )(xt, params['w1'], params['b1'], params['w2'], params['b2'],
      params['w3m'], params['b3m'], params['w3a'], params['b3a'],
      params['bn_scale'], params['bn_shift'])

    flow = flow_t.T                                    # (n, d)
    if nb % 2 == 1:                                    # undo folded Reverse() parity
        flow = flow[:, ::-1]
    logdet = ld_t.reshape(n, 1) + params['ld_const']   # add constant BN logdet term

    if num_reads is not None:
        flow = flow.reshape(-1, num_reads, d)
        logdet = logdet.reshape(-1, num_reads)
    return flow, {'recon_x': flow, 'logdet': logdet}


# ----------------------------------------------------------------------------
# Pure-JAX reference (faithful per-block computation with explicit Reverse layers),
# used only for the correctness check. matmul_dtype lets us match the kernel's
# bf16-at-the-MXU numerics exactly, or run the full-f32 spec.
# ----------------------------------------------------------------------------
def flow_reference(logits, raw, matmul_dtype=jnp.float32):
    d = logits.shape[-1]
    x = logits.reshape(-1, d).astype(jnp.float32)
    ld = jnp.zeros((x.shape[0], 1), jnp.float32)

    def mm(lhs, rhs):
        return jnp.dot(lhs.astype(matmul_dtype), rhs.astype(matmul_dtype),
                       preferred_element_type=jnp.float32)

    for blk in range(raw['W1'].shape[0]):
        hh = jnp.tanh(mm(x, raw['W1'][blk].T) + raw['b1'][blk])
        hh = jnp.tanh(mm(hh, raw['W2'][blk].T) + raw['b2'][blk])
        ma = mm(hh, raw['W3'][blk].T) + raw['b3'][blk]
        m, a = ma[:, :d], ma[:, d:]
        x = (x - m) * jnp.exp(-a)
        ld = ld - jnp.sum(a, axis=-1, keepdims=True)
        var = raw['r_var'][blk]
        x = jnp.exp(raw['log_gamma'][blk]) * (x - raw['r_mean'][blk]) / jnp.sqrt(var) \
            + raw['beta'][blk]
        ld = ld + jnp.sum(raw['log_gamma'][blk] - 0.5 * jnp.log(var))
        x = x[:, ::-1]

    if logits.ndim == 3:
        b, r, _ = logits.shape
        return x.reshape(b, r, d), ld.reshape(b, r)
    return x, ld


if __name__ == "__main__":
    key = jax.random.PRNGKey(0)
    k_param, k_x = jax.random.split(key)

    # config: continuous_size=16, latent_size=32, memory_read_steps=8, flow_type='maf'
    batch, num_reads, continuous_size, latent_size = 2, 8, 16, 32

    raw = init_raw_flow_params(k_param, continuous_size, latent_size)
    params = pack_kernel_params(raw, matmul_dtype=jnp.bfloat16)
    logits = jax.random.normal(k_x, (batch, num_reads, continuous_size), jnp.float32)

    flow, extras = flow_reparameterize(logits, params)
    jax.block_until_ready((flow, extras['logdet']))

    assert flow.shape == (batch, num_reads, continuous_size)
    assert extras['logdet'].shape == (batch, num_reads)

    # Tight check against a reference with identical numerics (bf16 at the matmuls,
    # f32 accumulation / transcendentals / coupling).
    ref_flow, ref_ld = flow_reference(logits, raw, matmul_dtype=jnp.bfloat16)
    assert jnp.allclose(flow, ref_flow, atol=2e-3, rtol=2e-3), "flow mismatch (bf16 ref)"
    assert jnp.allclose(extras['logdet'], ref_ld, atol=2e-3, rtol=2e-3), "logdet mismatch (bf16 ref)"

    # Loose sanity check against the full-f32 spec (bf16 MXU rounding compounds over
    # 5 stacked blocks, so this is intentionally coarse).
    ref_flow32, ref_ld32 = flow_reference(logits, raw, matmul_dtype=jnp.float32)
    assert jnp.allclose(flow, ref_flow32, atol=1e-1, rtol=1e-1), "flow far from f32 spec"
    assert jnp.allclose(extras['logdet'], ref_ld32, atol=1e-1, rtol=1e-1), "logdet far from f32 spec"

    print("KERNEL_OK")
</pallas_src>

<mosaic_0001>
module attributes {stable_mosaic.version = 11 : i64} {
  func.func @_flow_kernel(%arg0: i32, %arg1: memref<16x128xf32, #tpu.memory_space<vmem>>, %arg2: memref<5x32x16xbf16, #tpu.memory_space<vmem>>, %arg3: memref<5x32x1xf32, #tpu.memory_space<vmem>>, %arg4: memref<5x32x32xbf16, #tpu.memory_space<vmem>>, %arg5: memref<5x32x1xf32, #tpu.memory_space<vmem>>, %arg6: memref<5x16x32xbf16, #tpu.memory_space<vmem>>, %arg7: memref<5x16x1xf32, #tpu.memory_space<vmem>>, %arg8: memref<5x16x32xbf16, #tpu.memory_space<vmem>>, %arg9: memref<5x16x1xf32, #tpu.memory_space<vmem>>, %arg10: memref<5x16x1xf32, #tpu.memory_space<vmem>>, %arg11: memref<5x16x1xf32, #tpu.memory_space<vmem>>, %arg12: memref<16x128xf32, #tpu.memory_space<vmem>>, %arg13: memref<1x128xf32, #tpu.memory_space<vmem>>) attributes {dimension_semantics = [#tpu.dimension_semantics<parallel>], iteration_bounds = array<i64: 1>, scalar_prefetch = 0 : i64, scratch_operands = 0 : i64, tpu.core_type = #tpu.core_type<tc>, window_params = [{transform_indices = @transform_0, window_bounds = array<i64: 16, 128>}, {pipeline_mode = #tpu.pipeline_mode<synchronous>, transform_indices = @transform_1, window_bounds = array<i64: 5, 32, 16>}, {pipeline_mode = #tpu.pipeline_mode<synchronous>, transform_indices = @transform_2, window_bounds = array<i64: 5, 32, 1>}, {pipeline_mode = #tpu.pipeline_mode<synchronous>, transform_indices = @transform_3, window_bounds = array<i64: 5, 32, 32>}, {pipeline_mode = #tpu.pipeline_mode<synchronous>, transform_indices = @transform_4, window_bounds = array<i64: 5, 32, 1>}, {pipeline_mode = #tpu.pipeline_mode<synchronous>, transform_indices = @transform_5, window_bounds = array<i64: 5, 16, 32>}, {pipeline_mode = #tpu.pipeline_mode<synchronous>, transform_indices = @transform_6, window_bounds = array<i64: 5, 16, 1>}, {pipeline_mode = #tpu.pipeline_mode<synchronous>, transform_indices = @transform_7, window_bounds = array<i64: 5, 16, 32>}, {pipeline_mode = #tpu.pipeline_mode<synchronous>, transform_indices = @transform_8, window_bounds = array<i64: 5, 16, 1>}, {pipeline_mode = #tpu.pipeline_mode<synchronous>, transform_indices = @transform_9, window_bounds = array<i64: 5, 16, 1>}, {pipeline_mode = #tpu.pipeline_mode<synchronous>, transform_indices = @transform_10, window_bounds = array<i64: 5, 16, 1>}, {transform_indices = @transform_11, window_bounds = array<i64: 16, 128>}, {transform_indices = @transform_12, window_bounds = array<i64: 1, 128>}]} {
    %c0 = arith.constant 0 : index
    %c0_0 = arith.constant 0 : index
    %0 = vector.load %arg1[%c0, %c0_0] : memref<16x128xf32, #tpu.memory_space<vmem>>, vector<16x128xf32>
    %cst = arith.constant 0.000000e+00 : f32
    %1 = vector.broadcast %cst : f32 to vector<1x128xf32>
    %2 = arith.truncf %0 : vector<16x128xf32> to vector<16x128xbf16>
    %c0_1 = arith.constant 0 : index
    %c0_2 = arith.constant 0 : index
    %c0_3 = arith.constant 0 : index
    %3 = vector.load %arg2[%c0_1, %c0_2, %c0_3] : memref<5x32x16xbf16, #tpu.memory_space<vmem>>, vector<1x32x16xbf16>
    %4 = vector.shape_cast %3 : vector<1x32x16xbf16> to vector<32x16xbf16>
    %cst_4 = arith.constant dense<0.000000e+00> : vector<32x128xf32>
    %5 = tpu.matmul %4, %2, %cst_4 {dimension_numbers = #tpu.dot_dimension_numbers<[1], [0], [0], [1], [0, 0, 1, 1], [], []>} : vector<32x16xbf16>, vector<16x128xbf16>, vector<32x128xf32> -> vector<32x128xf32>
    %c0_5 = arith.constant 0 : index
    %c0_6 = arith.constant 0 : index
    %c0_7 = arith.constant 0 : index
    %6 = vector.load %arg3[%c0_5, %c0_6, %c0_7] : memref<5x32x1xf32, #tpu.memory_space<vmem>>, vector<1x32x1xf32>
    %7 = vector.shape_cast %6 : vector<1x32x1xf32> to vector<32x1xf32>
    %8 = vector.broadcast %7 : vector<32x1xf32> to vector<32x128xf32>
    %9 = arith.addf %5, %8 : vector<32x128xf32>
    %10 = math.tanh %9 : vector<32x128xf32>
    %11 = arith.truncf %10 : vector<32x128xf32> to vector<32x128xbf16>
    %c0_8 = arith.constant 0 : index
    %c0_9 = arith.constant 0 : index
    %c0_10 = arith.constant 0 : index
    %12 = vector.load %arg4[%c0_8, %c0_9, %c0_10] : memref<5x32x32xbf16, #tpu.memory_space<vmem>>, vector<1x32x32xbf16>
    %13 = vector.shape_cast %12 : vector<1x32x32xbf16> to vector<32x32xbf16>
    %cst_11 = arith.constant dense<0.000000e+00> : vector<32x128xf32>
    %14 = tpu.matmul %13, %11, %cst_11 {dimension_numbers = #tpu.dot_dimension_numbers<[1], [0], [0], [1], [0, 0, 1, 1], [], []>} : vector<32x32xbf16>, vector<32x128xbf16>, vector<32x128xf32> -> vector<32x128xf32>
    %c0_12 = arith.constant 0 : index
    %c0_13 = arith.constant 0 : index
    %c0_14 = arith.constant 0 : index
    %15 = vector.load %arg5[%c0_12, %c0_13, %c0_14] : memref<5x32x1xf32, #tpu.memory_space<vmem>>, vector<1x32x1xf32>
    %16 = vector.shape_cast %15 : vector<1x32x1xf32> to vector<32x1xf32>
    %17 = vector.broadcast %16 : vector<32x1xf32> to vector<32x128xf32>
    %18 = arith.addf %14, %17 : vector<32x128xf32>
    %19 = math.tanh %18 : vector<32x128xf32>
    %20 = arith.truncf %19 : vector<32x128xf32> to vector<32x128xbf16>
    %c0_15 = arith.constant 0 : index
    %c0_16 = arith.constant 0 : index
    %c0_17 = arith.constant 0 : index
    %21 = vector.load %arg6[%c0_15, %c0_16, %c0_17] : memref<5x16x32xbf16, #tpu.memory_space<vmem>>, vector<1x16x32xbf16>
    %22 = vector.shape_cast %21 : vector<1x16x32xbf16> to vector<16x32xbf16>
    %cst_18 = arith.constant dense<0.000000e+00> : vector<16x128xf32>
    %23 = tpu.matmul %22, %20, %cst_18 {dimension_numbers = #tpu.dot_dimension_numbers<[1], [0], [0], [1], [0, 0, 1, 1], [], []>} : vector<16x32xbf16>, vector<32x128xbf16>, vector<16x128xf32> -> vector<16x128xf32>
    %c0_19 = arith.constant 0 : index
    %c0_20 = arith.constant 0 : index
    %c0_21 = arith.constant 0 : index
    %24 = vector.load %arg7[%c0_19, %c0_20, %c0_21] : memref<5x16x1xf32, #tpu.memory_space<vmem>>, vector<1x16x1xf32>
    %25 = vector.shape_cast %24 : vector<1x16x1xf32> to vector<16x1xf32>
    %26 = vector.broadcast %25 : vector<16x1xf32> to vector<16x128xf32>
    %27 = arith.addf %23, %26 : vector<16x128xf32>
    %c0_22 = arith.constant 0 : index
    %c0_23 = arith.constant 0 : index
    %c0_24 = arith.constant 0 : index
    %28 = vector.load %arg8[%c0_22, %c0_23, %c0_24] : memref<5x16x32xbf16, #tpu.memory_space<vmem>>, vector<1x16x32xbf16>
    %29 = vector.shape_cast %28 : vector<1x16x32xbf16> to vector<16x32xbf16>
    %cst_25 = arith.constant dense<0.000000e+00> : vector<16x128xf32>
    %30 = tpu.matmul %29, %20, %cst_25 {dimension_numbers = #tpu.dot_dimension_numbers<[1], [0], [0], [1], [0, 0, 1, 1], [], []>} : vector<16x32xbf16>, vector<32x128xbf16>, vector<16x128xf32> -> vector<16x128xf32>
    %c0_26 = arith.constant 0 : index
    %c0_27 = arith.constant 0 : index
    %c0_28 = arith.constant 0 : index
    %31 = vector.load %arg9[%c0_26, %c0_27, %c0_28] : memref<5x16x1xf32, #tpu.memory_space<vmem>>, vector<1x16x1xf32>
    %32 = vector.shape_cast %31 : vector<1x16x1xf32> to vector<16x1xf32>
    %33 = vector.broadcast %32 : vector<16x1xf32> to vector<16x128xf32>
    %34 = arith.addf %30, %33 : vector<16x128xf32>
    %35 = arith.subf %0, %27 : vector<16x128xf32>
    %cst_29 = arith.constant 0.000000e+00 : f32
    %36 = vector.broadcast %cst_29 : f32 to vector<16x128xf32>
    %37 = arith.subf %36, %34 : vector<16x128xf32>
    %38 = math.exp %37 : vector<16x128xf32>
    %39 = arith.mulf %35, %38 : vector<16x128xf32>
    %cst_30 = arith.constant dense<0.000000e+00> : vector<128xf32>
    %40 = vector.multi_reduction <add>, %34, %cst_30 [0] : vector<16x128xf32> to vector<128xf32>
    %41 = vector.shape_cast %40 : vector<128xf32> to vector<1x128xf32>
    %42 = arith.subf %1, %41 : vector<1x128xf32>
    %c0_31 = arith.constant 0 : index
    %c0_32 = arith.constant 0 : index
    %c0_33 = arith.constant 0 : index
    %43 = vector.load %arg10[%c0_31, %c0_32, %c0_33] : memref<5x16x1xf32, #tpu.memory_space<vmem>>, vector<1x16x1xf32>
    %44 = vector.shape_cast %43 : vector<1x16x1xf32> to vector<16x1xf32>
    %45 = vector.broadcast %44 : vector<16x1xf32> to vector<16x128xf32>
    %46 = arith.mulf %39, %45 : vector<16x128xf32>
    %c0_34 = arith.constant 0 : index
    %c0_35 = arith.constant 0 : index
    %c0_36 = arith.constant 0 : index
    %47 = vector.load %arg11[%c0_34, %c0_35, %c0_36] : memref<5x16x1xf32, #tpu.memory_space<vmem>>, vector<1x16x1xf32>
    %48 = vector.shape_cast %47 : vector<1x16x1xf32> to vector<16x1xf32>
    %49 = vector.broadcast %48 : vector<16x1xf32> to vector<16x128xf32>
    %50 = arith.addf %46, %49 : vector<16x128xf32>
    %51 = arith.truncf %50 : vector<16x128xf32> to vector<16x128xbf16>
    %c1 = arith.constant 1 : index
    %c0_37 = arith.constant 0 : index
    %c0_38 = arith.constant 0 : index
    %52 = vector.load %arg2[%c1, %c0_37, %c0_38] : memref<5x32x16xbf16, #tpu.memory_space<vmem>>, vector<1x32x16xbf16>
    %53 = vector.shape_cast %52 : vector<1x32x16xbf16> to vector<32x16xbf16>
    %cst_39 = arith.constant dense<0.000000e+00> : vector<32x128xf32>
    %54 = tpu.matmul %53, %51, %cst_39 {dimension_numbers = #tpu.dot_dimension_numbers<[1], [0], [0], [1], [0, 0, 1, 1], [], []>} : vector<32x16xbf16>, vector<16x128xbf16>, vector<32x128xf32> -> vector<32x128xf32>
    %c1_40 = arith.constant 1 : index
    %c0_41 = arith.constant 0 : index
    %c0_42 = arith.constant 0 : index
    %55 = vector.load %arg3[%c1_40, %c0_41, %c0_42] : memref<5x32x1xf32, #tpu.memory_space<vmem>>, vector<1x32x1xf32>
    %56 = vector.shape_cast %55 : vector<1x32x1xf32> to vector<32x1xf32>
    %57 = vector.broadcast %56 : vector<32x1xf32> to vector<32x128xf32>
    %58 = arith.addf %54, %57 : vector<32x128xf32>
    %59 = math.tanh %58 : vector<32x128xf32>
    %60 = arith.truncf %59 : vector<32x128xf32> to vector<32x128xbf16>
    %c1_43 = arith.constant 1 : index
    %c0_44 = arith.constant 0 : index
    %c0_45 = arith.constant 0 : index
    %61 = vector.load %arg4[%c1_43, %c0_44, %c0_45] : memref<5x32x32xbf16, #tpu.memory_space<vmem>>, vector<1x32x32xbf16>
    %62 = vector.shape_cast %61 : vector<1x32x32xbf16> to vector<32x32xbf16>
    %cst_46 = arith.constant dense<0.000000e+00> : vector<32x128xf32>
    %63 = tpu.matmul %62, %60, %cst_46 {dimension_numbers = #tpu.dot_dimension_numbers<[1], [0], [0], [1], [0, 0, 1, 1], [], []>} : vector<32x32xbf16>, vector<32x128xbf16>, vector<32x128xf32> -> vector<32x128xf32>
    %c1_47 = arith.constant 1 : index
    %c0_48 = arith.constant 0 : index
    %c0_49 = arith.constant 0 : index
    %64 = vector.load %arg5[%c1_47, %c0_48, %c0_49] : memref<5x32x1xf32, #tpu.memory_space<vmem>>, vector<1x32x1xf32>
    %65 = vector.shape_cast %64 : vector<1x32x1xf32> to vector<32x1xf32>
    %66 = vector.broadcast %65 : vector<32x1xf32> to vector<32x128xf32>
    %67 = arith.addf %63, %66 : vector<32x128xf32>
    %68 = math.tanh %67 : vector<32x128xf32>
    %69 = arith.truncf %68 : vector<32x128xf32> to vector<32x128xbf16>
    %c1_50 = arith.constant 1 : index
    %c0_51 = arith.constant 0 : index
    %c0_52 = arith.constant 0 : index
    %70 = vector.load %arg6[%c1_50, %c0_51, %c0_52] : memref<5x16x32xbf16, #tpu.memory_space<vmem>>, vector<1x16x32xbf16>
    %71 = vector.shape_cast %70 : vector<1x16x32xbf16> to vector<16x32xbf16>
    %cst_53 = arith.constant dense<0.000000e+00> : vector<16x128xf32>
    %72 = tpu.matmul %71, %69, %cst_53 {dimension_numbers = #tpu.dot_dimension_numbers<[1], [0], [0], [1], [0, 0, 1, 1], [], []>} : vector<16x32xbf16>, vector<32x128xbf16>, vector<16x128xf32> -> vector<16x128xf32>
    %c1_54 = arith.constant 1 : index
    %c0_55 = arith.constant 0 : index
    %c0_56 = arith.constant 0 : index
    %73 = vector.load %arg7[%c1_54, %c0_55, %c0_56] : memref<5x16x1xf32, #tpu.memory_space<vmem>>, vector<1x16x1xf32>
    %74 = vector.shape_cast %73 : vector<1x16x1xf32> to vector<16x1xf32>
    %75 = vector.broadcast %74 : vector<16x1xf32> to vector<16x128xf32>
    %76 = arith.addf %72, %75 : vector<16x128xf32>
    %c1_57 = arith.constant 1 : index
    %c0_58 = arith.constant 0 : index
    %c0_59 = arith.constant 0 : index
    %77 = vector.load %arg8[%c1_57, %c0_58, %c0_59] : memref<5x16x32xbf16, #tpu.memory_space<vmem>>, vector<1x16x32xbf16>
    %78 = vector.shape_cast %77 : vector<1x16x32xbf16> to vector<16x32xbf16>
    %cst_60 = arith.constant dense<0.000000e+00> : vector<16x128xf32>
    %79 = tpu.matmul %78, %69, %cst_60 {dimension_numbers = #tpu.dot_dimension_numbers<[1], [0], [0], [1], [0, 0, 1, 1], [], []>} : vector<16x32xbf16>, vector<32x128xbf16>, vector<16x128xf32> -> vector<16x128xf32>
    %c1_61 = arith.constant 1 : index
    %c0_62 = arith.constant 0 : index
    %c0_63 = arith.constant 0 : index
    %80 = vector.load %arg9[%c1_61, %c0_62, %c0_63] : memref<5x16x1xf32, #tpu.memory_space<vmem>>, vector<1x16x1xf32>
    %81 = vector.shape_cast %80 : vector<1x16x1xf32> to vector<16x1xf32>
    %82 = vector.broadcast %81 : vector<16x1xf32> to vector<16x128xf32>
    %83 = arith.addf %79, %82 : vector<16x128xf32>
    %84 = arith.subf %50, %76 : vector<16x128xf32>
    %cst_64 = arith.constant 0.000000e+00 : f32
    %85 = vector.broadcast %cst_64 : f32 to vector<16x128xf32>
    %86 = arith.subf %85, %83 : vector<16x128xf32>
    %87 = math.exp %86 : vector<16x128xf32>
    %88 = arith.mulf %84, %87 : vector<16x128xf32>
    %cst_65 = arith.constant dense<0.000000e+00> : vector<128xf32>
    %89 = vector.multi_reduction <add>, %83, %cst_65 [0] : vector<16x128xf32> to vector<128xf32>
    %90 = vector.shape_cast %89 : vector<128xf32> to vector<1x128xf32>
    %91 = arith.subf %42, %90 : vector<1x128xf32>
    %c1_66 = arith.constant 1 : index
    %c0_67 = arith.constant 0 : index
    %c0_68 = arith.constant 0 : index
    %92 = vector.load %arg10[%c1_66, %c0_67, %c0_68] : memref<5x16x1xf32, #tpu.memory_space<vmem>>, vector<1x16x1xf32>
    %93 = vector.shape_cast %92 : vector<1x16x1xf32> to vector<16x1xf32>
    %94 = vector.broadcast %93 : vector<16x1xf32> to vector<16x128xf32>
    %95 = arith.mulf %88, %94 : vector<16x128xf32>
    %c1_69 = arith.constant 1 : index
    %c0_70 = arith.constant 0 : index
    %c0_71 = arith.constant 0 : index
    %96 = vector.load %arg11[%c1_69, %c0_70, %c0_71] : memref<5x16x1xf32, #tpu.memory_space<vmem>>, vector<1x16x1xf32>
    %97 = vector.shape_cast %96 : vector<1x16x1xf32> to vector<16x1xf32>
    %98 = vector.broadcast %97 : vector<16x1xf32> to vector<16x128xf32>
    %99 = arith.addf %95, %98 : vector<16x128xf32>
    %100 = arith.truncf %99 : vector<16x128xf32> to vector<16x128xbf16>
    %c2 = arith.constant 2 : index
    %c0_72 = arith.constant 0 : index
    %c0_73 = arith.constant 0 : index
    %101 = vector.load %arg2[%c2, %c0_72, %c0_73] : memref<5x32x16xbf16, #tpu.memory_space<vmem>>, vector<1x32x16xbf16>
    %102 = vector.shape_cast %101 : vector<1x32x16xbf16> to vector<32x16xbf16>
    %cst_74 = arith.constant dense<0.000000e+00> : vector<32x128xf32>
    %103 = tpu.matmul %102, %100, %cst_74 {dimension_numbers = #tpu.dot_dimension_numbers<[1], [0], [0], [1], [0, 0, 1, 1], [], []>} : vector<32x16xbf16>, vector<16x128xbf16>, vector<32x128xf32> -> vector<32x128xf32>
    %c2_75 = arith.constant 2 : index
    %c0_76 = arith.constant 0 : index
    %c0_77 = arith.constant 0 : index
    %104 = vector.load %arg3[%c2_75, %c0_76, %c0_77] : memref<5x32x1xf32, #tpu.memory_space<vmem>>, vector<1x32x1xf32>
    %105 = vector.shape_cast %104 : vector<1x32x1xf32> to vector<32x1xf32>
    %106 = vector.broadcast %105 : vector<32x1xf32> to vector<32x128xf32>
    %107 = arith.addf %103, %106 : vector<32x128xf32>
    %108 = math.tanh %107 : vector<32x128xf32>
    %109 = arith.truncf %108 : vector<32x128xf32> to vector<32x128xbf16>
    %c2_78 = arith.constant 2 : index
    %c0_79 = arith.constant 0 : index
    %c0_80 = arith.constant 0 : index
    %110 = vector.load %arg4[%c2_78, %c0_79, %c0_80] : memref<5x32x32xbf16, #tpu.memory_space<vmem>>, vector<1x32x32xbf16>
    %111 = vector.shape_cast %110 : vector<1x32x32xbf16> to vector<32x32xbf16>
    %cst_81 = arith.constant dense<0.000000e+00> : vector<32x128xf32>
    %112 = tpu.matmul %111, %109, %cst_81 {dimension_numbers = #tpu.dot_dimension_numbers<[1], [0], [0], [1], [0, 0, 1, 1], [], []>} : vector<32x32xbf16>, vector<32x128xbf16>, vector<32x128xf32> -> vector<32x128xf32>
    %c2_82 = arith.constant 2 : index
    %c0_83 = arith.constant 0 : index
    %c0_84 = arith.constant 0 : index
    %113 = vector.load %arg5[%c2_82, %c0_83, %c0_84] : memref<5x32x1xf32, #tpu.memory_space<vmem>>, vector<1x32x1xf32>
    %114 = vector.shape_cast %113 : vector<1x32x1xf32> to vector<32x1xf32>
    %115 = vector.broadcast %114 : vector<32x1xf32> to vector<32x128xf32>
    %116 = arith.addf %112, %115 : vector<32x128xf32>
    %117 = math.tanh %116 : vector<32x128xf32>
    %118 = arith.truncf %117 : vector<32x128xf32> to vector<32x128xbf16>
    %c2_85 = arith.constant 2 : index
    %c0_86 = arith.constant 0 : index
    %c0_87 = arith.constant 0 : index
    %119 = vector.load %arg6[%c2_85, %c0_86, %c0_87] : memref<5x16x32xbf16, #tpu.memory_space<vmem>>, vector<1x16x32xbf16>
    %120 = vector.shape_cast %119 : vector<1x16x32xbf16> to vector<16x32xbf16>
    %cst_88 = arith.constant dense<0.000000e+00> : vector<16x128xf32>
    %121 = tpu.matmul %120, %118, %cst_88 {dimension_numbers = #tpu.dot_dimension_numbers<[1], [0], [0], [1], [0, 0, 1, 1], [], []>} : vector<16x32xbf16>, vector<32x128xbf16>, vector<16x128xf32> -> vector<16x128xf32>
    %c2_89 = arith.constant 2 : index
    %c0_90 = arith.constant 0 : index
    %c0_91 = arith.constant 0 : index
    %122 = vector.load %arg7[%c2_89, %c0_90, %c0_91] : memref<5x16x1xf32, #tpu.memory_space<vmem>>, vector<1x16x1xf32>
    %123 = vector.shape_cast %122 : vector<1x16x1xf32> to vector<16x1xf32>
    %124 = vector.broadcast %123 : vector<16x1xf32> to vector<16x128xf32>
    %125 = arith.addf %121, %124 : vector<16x128xf32>
    %c2_92 = arith.constant 2 : index
    %c0_93 = arith.constant 0 : index
    %c0_94 = arith.constant 0 : index
    %126 = vector.load %arg8[%c2_92, %c0_93, %c0_94] : memref<5x16x32xbf16, #tpu.memory_space<vmem>>, vector<1x16x32xbf16>
    %127 = vector.shape_cast %126 : vector<1x16x32xbf16> to vector<16x32xbf16>
    %cst_95 = arith.constant dense<0.000000e+00> : vector<16x128xf32>
    %128 = tpu.matmul %127, %118, %cst_95 {dimension_numbers = #tpu.dot_dimension_numbers<[1], [0], [0], [1], [0, 0, 1, 1], [], []>} : vector<16x32xbf16>, vector<32x128xbf16>, vector<16x128xf32> -> vector<16x128xf32>
    %c2_96 = arith.constant 2 : index
    %c0_97 = arith.constant 0 : index
    %c0_98 = arith.constant 0 : index
    %129 = vector.load %arg9[%c2_96, %c0_97, %c0_98] : memref<5x16x1xf32, #tpu.memory_space<vmem>>, vector<1x16x1xf32>
    %130 = vector.shape_cast %129 : vector<1x16x1xf32> to vector<16x1xf32>
    %131 = vector.broadcast %130 : vector<16x1xf32> to vector<16x128xf32>
    %132 = arith.addf %128, %131 : vector<16x128xf32>
    %133 = arith.subf %99, %125 : vector<16x128xf32>
    %cst_99 = arith.constant 0.000000e+00 : f32
    %134 = vector.broadcast %cst_99 : f32 to vector<16x128xf32>
    %135 = arith.subf %134, %132 : vector<16x128xf32>
    %136 = math.exp %135 : vector<16x128xf32>
    %137 = arith.mulf %133, %136 : vector<16x128xf32>
    %cst_100 = arith.constant dense<0.000000e+00> : vector<128xf32>
    %138 = vector.multi_reduction <add>, %132, %cst_100 [0] : vector<16x128xf32> to vector<128xf32>
    %139 = vector.shape_cast %138 : vector<128xf32> to vector<1x128xf32>
    %140 = arith.subf %91, %139 : vector<1x128xf32>
    %c2_101 = arith.constant 2 : index
    %c0_102 = arith.constant 0 : index
    %c0_103 = arith.constant 0 : index
    %141 = vector.load %arg10[%c2_101, %c0_102, %c0_103] : memref<5x16x1xf32, #tpu.memory_space<vmem>>, vector<1x16x1xf32>
    %142 = vector.shape_cast %141 : vector<1x16x1xf32> to vector<16x1xf32>
    %143 = vector.broadcast %142 : vector<16x1xf32> to vector<16x128xf32>
    %144 = arith.mulf %137, %143 : vector<16x128xf32>
    %c2_104 = arith.constant 2 : index
    %c0_105 = arith.constant 0 : index
    %c0_106 = arith.constant 0 : index
    %145 = vector.load %arg11[%c2_104, %c0_105, %c0_106] : memref<5x16x1xf32, #tpu.memory_space<vmem>>, vector<1x16x1xf32>
    %146 = vector.shape_cast %145 : vector<1x16x1xf32> to vector<16x1xf32>
    %147 = vector.broadcast %146 : vector<16x1xf32> to vector<16x128xf32>
    %148 = arith.addf %144, %147 : vector<16x128xf32>
    %149 = arith.truncf %148 : vector<16x128xf32> to vector<16x128xbf16>
    %c3 = arith.constant 3 : index
    %c0_107 = arith.constant 0 : index
    %c0_108 = arith.constant 0 : index
    %150 = vector.load %arg2[%c3, %c0_107, %c0_108] : memref<5x32x16xbf16, #tpu.memory_space<vmem>>, vector<1x32x16xbf16>
    %151 = vector.shape_cast %150 : vector<1x32x16xbf16> to vector<32x16xbf16>
    %cst_109 = arith.constant dense<0.000000e+00> : vector<32x128xf32>
    %152 = tpu.matmul %151, %149, %cst_109 {dimension_numbers = #tpu.dot_dimension_numbers<[1], [0], [0], [1], [0, 0, 1, 1], [], []>} : vector<32x16xbf16>, vector<16x128xbf16>, vector<32x128xf32> -> vector<32x128xf32>
    %c3_110 = arith.constant 3 : index
    %c0_111 = arith.constant 0 : index
    %c0_112 = arith.constant 0 : index
    %153 = vector.load %arg3[%c3_110, %c0_111, %c0_112] : memref<5x32x1xf32, #tpu.memory_space<vmem>>, vector<1x32x1xf32>
    %154 = vector.shape_cast %153 : vector<1x32x1xf32> to vector<32x1xf32>
    %155 = vector.broadcast %154 : vector<32x1xf32> to vector<32x128xf32>
    %156 = arith.addf %152, %155 : vector<32x128xf32>
    %157 = math.tanh %156 : vector<32x128xf32>
    %158 = arith.truncf %157 : vector<32x128xf32> to vector<32x128xbf16>
    %c3_113 = arith.constant 3 : index
    %c0_114 = arith.constant 0 : index
    %c0_115 = arith.constant 0 : index
    %159 = vector.load %arg4[%c3_113, %c0_114, %c0_115] : memref<5x32x32xbf16, #tpu.memory_space<vmem>>, vector<1x32x32xbf16>
    %160 = vector.shape_cast %159 : vector<1x32x32xbf16> to vector<32x32xbf16>
    %cst_116 = arith.constant dense<0.000000e+00> : vector<32x128xf32>
    %161 = tpu.matmul %160, %158, %cst_116 {dimension_numbers = #tpu.dot_dimension_numbers<[1], [0], [0], [1], [0, 0, 1, 1], [], []>} : vector<32x32xbf16>, vector<32x128xbf16>, vector<32x128xf32> -> vector<32x128xf32>
    %c3_117 = arith.constant 3 : index
    %c0_118 = arith.constant 0 : index
    %c0_119 = arith.constant 0 : index
    %162 = vector.load %arg5[%c3_117, %c0_118, %c0_119] : memref<5x32x1xf32, #tpu.memory_space<vmem>>, vector<1x32x1xf32>
    %163 = vector.shape_cast %162 : vector<1x32x1xf32> to vector<32x1xf32>
    %164 = vector.broadcast %163 : vector<32x1xf32> to vector<32x128xf32>
    %165 = arith.addf %161, %164 : vector<32x128xf32>
    %166 = math.tanh %165 : vector<32x128xf32>
    %167 = arith.truncf %166 : vector<32x128xf32> to vector<32x128xbf16>
    %c3_120 = arith.constant 3 : index
    %c0_121 = arith.constant 0 : index
    %c0_122 = arith.constant 0 : index
    %168 = vector.load %arg6[%c3_120, %c0_121, %c0_122] : memref<5x16x32xbf16, #tpu.memory_space<vmem>>, vector<1x16x32xbf16>
    %169 = vector.shape_cast %168 : vector<1x16x32xbf16> to vector<16x32xbf16>
    %cst_123 = arith.constant dense<0.000000e+00> : vector<16x128xf32>
    %170 = tpu.matmul %169, %167, %cst_123 {dimension_numbers = #tpu.dot_dimension_numbers<[1], [0], [0], [1], [0, 0, 1, 1], [], []>} : vector<16x32xbf16>, vector<32x128xbf16>, vector<16x128xf32> -> vector<16x128xf32>
    %c3_124 = arith.constant 3 : index
    %c0_125 = arith.constant 0 : index
    %c0_126 = arith.constant 0 : index
    %171 = vector.load %arg7[%c3_124, %c0_125, %c0_126] : memref<5x16x1xf32, #tpu.memory_space<vmem>>, vector<1x16x1xf32>
    %172 = vector.shape_cast %171 : vector<1x16x1xf32> to vector<16x1xf32>
    %173 = vector.broadcast %172 : vector<16x1xf32> to vector<16x128xf32>
    %174 = arith.addf %170, %173 : vector<16x128xf32>
    %c3_127 = arith.constant 3 : index
    %c0_128 = arith.constant 0 : index
    %c0_129 = arith.constant 0 : index
    %175 = vector.load %arg8[%c3_127, %c0_128, %c0_129] : memref<5x16x32xbf16, #tpu.memory_space<vmem>>, vector<1x16x32xbf16>
    %176 = vector.shape_cast %175 : vector<1x16x32xbf16> to vector<16x32xbf16>
    %cst_130 = arith.constant dense<0.000000e+00> : vector<16x128xf32>
    %177 = tpu.matmul %176, %167, %cst_130 {dimension_numbers = #tpu.dot_dimension_numbers<[1], [0], [0], [1], [0, 0, 1, 1], [], []>} : vector<16x32xbf16>, vector<32x128xbf16>, vector<16x128xf32> -> vector<16x128xf32>
    %c3_131 = arith.constant 3 : index
    %c0_132 = arith.constant 0 : index
    %c0_133 = arith.constant 0 : index
    %178 = vector.load %arg9[%c3_131, %c0_132, %c0_133] : memref<5x16x1xf32, #tpu.memory_space<vmem>>, vector<1x16x1xf32>
    %179 = vector.shape_cast %178 : vector<1x16x1xf32> to vector<16x1xf32>
    %180 = vector.broadcast %179 : vector<16x1xf32> to vector<16x128xf32>
    %181 = arith.addf %177, %180 : vector<16x128xf32>
    %182 = arith.subf %148, %174 : vector<16x128xf32>
    %cst_134 = arith.constant 0.000000e+00 : f32
    %183 = vector.broadcast %cst_134 : f32 to vector<16x128xf32>
    %184 = arith.subf %183, %181 : vector<16x128xf32>
    %185 = math.exp %184 : vector<16x128xf32>
    %186 = arith.mulf %182, %185 : vector<16x128xf32>
    %cst_135 = arith.constant dense<0.000000e+00> : vector<128xf32>
    %187 = vector.multi_reduction <add>, %181, %cst_135 [0] : vector<16x128xf32> to vector<128xf32>
    %188 = vector.shape_cast %187 : vector<128xf32> to vector<1x128xf32>
    %189 = arith.subf %140, %188 : vector<1x128xf32>
    %c3_136 = arith.constant 3 : index
    %c0_137 = arith.constant 0 : index
    %c0_138 = arith.constant 0 : index
    %190 = vector.load %arg10[%c3_136, %c0_137, %c0_138] : memref<5x16x1xf32, #tpu.memory_space<vmem>>, vector<1x16x1xf32>
    %191 = vector.shape_cast %190 : vector<1x16x1xf32> to vector<16x1xf32>
    %192 = vector.broadcast %191 : vector<16x1xf32> to vector<16x128xf32>
    %193 = arith.mulf %186, %192 : vector<16x128xf32>
    %c3_139 = arith.constant 3 : index
    %c0_140 = arith.constant 0 : index
    %c0_141 = arith.constant 0 : index
    %194 = vector.load %arg11[%c3_139, %c0_140, %c0_141] : memref<5x16x1xf32, #tpu.memory_space<vmem>>, vector<1x16x1xf32>
    %195 = vector.shape_cast %194 : vector<1x16x1xf32> to vector<16x1xf32>
    %196 = vector.broadcast %195 : vector<16x1xf32> to vector<16x128xf32>
    %197 = arith.addf %193, %196 : vector<16x128xf32>
    %198 = arith.truncf %197 : vector<16x128xf32> to vector<16x128xbf16>
    %c4 = arith.constant 4 : index
    %c0_142 = arith.constant 0 : index
    %c0_143 = arith.constant 0 : index
    %199 = vector.load %arg2[%c4, %c0_142, %c0_143] : memref<5x32x16xbf16, #tpu.memory_space<vmem>>, vector<1x32x16xbf16>
    %200 = vector.shape_cast %199 : vector<1x32x16xbf16> to vector<32x16xbf16>
    %cst_144 = arith.constant dense<0.000000e+00> : vector<32x128xf32>
    %201 = tpu.matmul %200, %198, %cst_144 {dimension_numbers = #tpu.dot_dimension_numbers<[1], [0], [0], [1], [0, 0, 1, 1], [], []>} : vector<32x16xbf16>, vector<16x128xbf16>, vector<32x128xf32> -> vector<32x128xf32>
    %c4_145 = arith.constant 4 : index
    %c0_146 = arith.constant 0 : index
    %c0_147 = arith.constant 0 : index
    %202 = vector.load %arg3[%c4_145, %c0_146, %c0_147] : memref<5x32x1xf32, #tpu.memory_space<vmem>>, vector<1x32x1xf32>
    %203 = vector.shape_cast %202 : vector<1x32x1xf32> to vector<32x1xf32>
    %204 = vector.broadcast %203 : vector<32x1xf32> to vector<32x128xf32>
    %205 = arith.addf %201, %204 : vector<32x128xf32>
    %206 = math.tanh %205 : vector<32x128xf32>
    %207 = arith.truncf %206 : vector<32x128xf32> to vector<32x128xbf16>
    %c4_148 = arith.constant 4 : index
    %c0_149 = arith.constant 0 : index
    %c0_150 = arith.constant 0 : index
    %208 = vector.load %arg4[%c4_148, %c0_149, %c0_150] : memref<5x32x32xbf16, #tpu.memory_space<vmem>>, vector<1x32x32xbf16>
    %209 = vector.shape_cast %208 : vector<1x32x32xbf16> to vector<32x32xbf16>
    %cst_151 = arith.constant dense<0.000000e+00> : vector<32x128xf32>
    %210 = tpu.matmul %209, %207, %cst_151 {dimension_numbers = #tpu.dot_dimension_numbers<[1], [0], [0], [1], [0, 0, 1, 1], [], []>} : vector<32x32xbf16>, vector<32x128xbf16>, vector<32x128xf32> -> vector<32x128xf32>
    %c4_152 = arith.constant 4 : index
    %c0_153 = arith.constant 0 : index
    %c0_154 = arith.constant 0 : index
    %211 = vector.load %arg5[%c4_152, %c0_153, %c0_154] : memref<5x32x1xf32, #tpu.memory_space<vmem>>, vector<1x32x1xf32>
    %212 = vector.shape_cast %211 : vector<1x32x1xf32> to vector<32x1xf32>
    %213 = vector.broadcast %212 : vector<32x1xf32> to vector<32x128xf32>
    %214 = arith.addf %210, %213 : vector<32x128xf32>
    %215 = math.tanh %214 : vector<32x128xf32>
    %216 = arith.truncf %215 : vector<32x128xf32> to vector<32x128xbf16>
    %c4_155 = arith.constant 4 : index
    %c0_156 = arith.constant 0 : index
    %c0_157 = arith.constant 0 : index
    %217 = vector.load %arg6[%c4_155, %c0_156, %c0_157] : memref<5x16x32xbf16, #tpu.memory_space<vmem>>, vector<1x16x32xbf16>
    %218 = vector.shape_cast %217 : vector<1x16x32xbf16> to vector<16x32xbf16>
    %cst_158 = arith.constant dense<0.000000e+00> : vector<16x128xf32>
    %219 = tpu.matmul %218, %216, %cst_158 {dimension_numbers = #tpu.dot_dimension_numbers<[1], [0], [0], [1], [0, 0, 1, 1], [], []>} : vector<16x32xbf16>, vector<32x128xbf16>, vector<16x128xf32> -> vector<16x128xf32>
    %c4_159 = arith.constant 4 : index
    %c0_160 = arith.constant 0 : index
    %c0_161 = arith.constant 0 : index
    %220 = vector.load %arg7[%c4_159, %c0_160, %c0_161] : memref<5x16x1xf32, #tpu.memory_space<vmem>>, vector<1x16x1xf32>
    %221 = vector.shape_cast %220 : vector<1x16x1xf32> to vector<16x1xf32>
    %222 = vector.broadcast %221 : vector<16x1xf32> to vector<16x128xf32>
    %223 = arith.addf %219, %222 : vector<16x128xf32>
    %c4_162 = arith.constant 4 : index
    %c0_163 = arith.constant 0 : index
    %c0_164 = arith.constant 0 : index
    %224 = vector.load %arg8[%c4_162, %c0_163, %c0_164] : memref<5x16x32xbf16, #tpu.memory_space<vmem>>, vector<1x16x32xbf16>
    %225 = vector.shape_cast %224 : vector<1x16x32xbf16> to vector<16x32xbf16>
    %cst_165 = arith.constant dense<0.000000e+00> : vector<16x128xf32>
    %226 = tpu.matmul %225, %216, %cst_165 {dimension_numbers = #tpu.dot_dimension_numbers<[1], [0], [0], [1], [0, 0, 1, 1], [], []>} : vector<16x32xbf16>, vector<32x128xbf16>, vector<16x128xf32> -> vector<16x128xf32>
    %c4_166 = arith.constant 4 : index
    %c0_167 = arith.constant 0 : index
    %c0_168 = arith.constant 0 : index
    %227 = vector.load %arg9[%c4_166, %c0_167, %c0_168] : memref<5x16x1xf32, #tpu.memory_space<vmem>>, vector<1x16x1xf32>
    %228 = vector.shape_cast %227 : vector<1x16x1xf32> to vector<16x1xf32>
    %229 = vector.broadcast %228 : vector<16x1xf32> to vector<16x128xf32>
    %230 = arith.addf %226, %229 : vector<16x128xf32>
    %231 = arith.subf %197, %223 : vector<16x128xf32>
    %cst_169 = arith.constant 0.000000e+00 : f32
    %232 = vector.broadcast %cst_169 : f32 to vector<16x128xf32>
    %233 = arith.subf %232, %230 : vector<16x128xf32>
    %234 = math.exp %233 : vector<16x128xf32>
    %235 = arith.mulf %231, %234 : vector<16x128xf32>
    %cst_170 = arith.constant dense<0.000000e+00> : vector<128xf32>
    %236 = vector.multi_reduction <add>, %230, %cst_170 [0] : vector<16x128xf32> to vector<128xf32>
    %237 = vector.shape_cast %236 : vector<128xf32> to vector<1x128xf32>
    %238 = arith.subf %189, %237 : vector<1x128xf32>
    %c4_171 = arith.constant 4 : index
    %c0_172 = arith.constant 0 : index
    %c0_173 = arith.constant 0 : index
    %239 = vector.load %arg10[%c4_171, %c0_172, %c0_173] : memref<5x16x1xf32, #tpu.memory_space<vmem>>, vector<1x16x1xf32>
    %240 = vector.shape_cast %239 : vector<1x16x1xf32> to vector<16x1xf32>
    %241 = vector.broadcast %240 : vector<16x1xf32> to vector<16x128xf32>
    %242 = arith.mulf %235, %241 : vector<16x128xf32>
    %c4_174 = arith.constant 4 : index
    %c0_175 = arith.constant 0 : index
    %c0_176 = arith.constant 0 : index
    %243 = vector.load %arg11[%c4_174, %c0_175, %c0_176] : memref<5x16x1xf32, #tpu.memory_space<vmem>>, vector<1x16x1xf32>
    %244 = vector.shape_cast %243 : vector<1x16x1xf32> to vector<16x1xf32>
    %245 = vector.broadcast %244 : vector<16x1xf32> to vector<16x128xf32>
    %246 = arith.addf %242, %245 : vector<16x128xf32>
    %c0_177 = arith.constant 0 : index
    %c0_178 = arith.constant 0 : index
    %247 = vector.load %arg12[%c0_177, %c0_178] : memref<16x128xf32, #tpu.memory_space<vmem>>, vector<16x128xf32>
    tpu.vector_store %arg12[%c0_177, %c0_178], %246 {strides = array<i32>} : memref<16x128xf32, #tpu.memory_space<vmem>>, vector<16x128xf32>,
    %c0_179 = arith.constant 0 : index
    %c0_180 = arith.constant 0 : index
    %248 = vector.load %arg13[%c0_179, %c0_180] : memref<1x128xf32, #tpu.memory_space<vmem>>, vector<1x128xf32>
    tpu.vector_store %arg13[%c0_179, %c0_180], %238 {strides = array<i32>} : memref<1x128xf32, #tpu.memory_space<vmem>>, vector<1x128xf32>,
    return
  }
  func.func @transform_0(%arg0: i32) -> (i32, i32) {
    %c0_i32 = arith.constant 0 : i32
    %c0_i32_0 = arith.constant 0 : i32
    return %c0_i32, %arg0 : i32, i32
  }
  func.func @transform_1(%arg0: i32) -> (i32, i32, i32) {
    %c0_i32 = arith.constant 0 : i32
    %c0_i32_0 = arith.constant 0 : i32
    %c0_i32_1 = arith.constant 0 : i32
    %c0_i32_2 = arith.constant 0 : i32
    return %c0_i32, %c0_i32_0, %c0_i32_1 : i32, i32, i32
  }
  func.func @transform_2(%arg0: i32) -> (i32, i32, i32) {
    %c0_i32 = arith.constant 0 : i32
    %c0_i32_0 = arith.constant 0 : i32
    %c0_i32_1 = arith.constant 0 : i32
    %c0_i32_2 = arith.constant 0 : i32
    return %c0_i32, %c0_i32_0, %c0_i32_1 : i32, i32, i32
  }
  func.func @transform_3(%arg0: i32) -> (i32, i32, i32) {
    %c0_i32 = arith.constant 0 : i32
    %c0_i32_0 = arith.constant 0 : i32
    %c0_i32_1 = arith.constant 0 : i32
    %c0_i32_2 = arith.constant 0 : i32
    return %c0_i32, %c0_i32_0, %c0_i32_1 : i32, i32, i32
  }
  func.func @transform_4(%arg0: i32) -> (i32, i32, i32) {
    %c0_i32 = arith.constant 0 : i32
    %c0_i32_0 = arith.constant 0 : i32
    %c0_i32_1 = arith.constant 0 : i32
    %c0_i32_2 = arith.constant 0 : i32
    return %c0_i32, %c0_i32_0, %c0_i32_1 : i32, i32, i32
  }
  func.func @transform_5(%arg0: i32) -> (i32, i32, i32) {
    %c0_i32 = arith.constant 0 : i32
    %c0_i32_0 = arith.constant 0 : i32
    %c0_i32_1 = arith.constant 0 : i32
    %c0_i32_2 = arith.constant 0 : i32
    return %c0_i32, %c0_i32_0, %c0_i32_1 : i32, i32, i32
  }
  func.func @transform_6(%arg0: i32) -> (i32, i32, i32) {
    %c0_i32 = arith.constant 0 : i32
    %c0_i32_0 = arith.constant 0 : i32
    %c0_i32_1 = arith.constant 0 : i32
    %c0_i32_2 = arith.constant 0 : i32
    return %c0_i32, %c0_i32_0, %c0_i32_1 : i32, i32, i32
  }
  func.func @transform_7(%arg0: i32) -> (i32, i32, i32) {
    %c0_i32 = arith.constant 0 : i32
    %c0_i32_0 = arith.constant 0 : i32
    %c0_i32_1 = arith.constant 0 : i32
    %c0_i32_2 = arith.constant 0 : i32
    return %c0_i32, %c0_i32_0, %c0_i32_1 : i32, i32, i32
  }
  func.func @transform_8(%arg0: i32) -> (i32, i32, i32) {
    %c0_i32 = arith.constant 0 : i32
    %c0_i32_0 = arith.constant 0 : i32
    %c0_i32_1 = arith.constant 0 : i32
    %c0_i32_2 = arith.constant 0 : i32
    return %c0_i32, %c0_i32_0, %c0_i32_1 : i32, i32, i32
  }
  func.func @transform_9(%arg0: i32) -> (i32, i32, i32) {
    %c0_i32 = arith.constant 0 : i32
    %c0_i32_0 = arith.constant 0 : i32
    %c0_i32_1 = arith.constant 0 : i32
    %c0_i32_2 = arith.constant 0 : i32
    return %c0_i32, %c0_i32_0, %c0_i32_1 : i32, i32, i32
  }
  func.func @transform_10(%arg0: i32) -> (i32, i32, i32) {
    %c0_i32 = arith.constant 0 : i32
    %c0_i32_0 = arith.constant 0 : i32
    %c0_i32_1 = arith.constant 0 : i32
    %c0_i32_2 = arith.constant 0 : i32
    return %c0_i32, %c0_i32_0, %c0_i32_1 : i32, i32, i32
  }
  func.func @transform_11(%arg0: i32) -> (i32, i32) {
    %c0_i32 = arith.constant 0 : i32
    %c0_i32_0 = arith.constant 0 : i32
    return %c0_i32, %arg0 : i32, i32
  }
  func.func @transform_12(%arg0: i32) -> (i32, i32) {
    %c0_i32 = arith.constant 0 : i32
    %c0_i32_0 = arith.constant 0 : i32
    return %c0_i32, %arg0 : i32, i32
  }
}

</mosaic_0001>

<llo_original>
// kernel: tpu_custom_call.1
$region0: #{tpu_custom_call.1}
  #allocation0 [shape = 'u32[]', space=smem, size = 0x4, offset = 0x4, fixed_abs, tag = 'smem constant byte address 0x4 - core index']
  #allocation1 [shape = 'u32[144,128]{1,0:T(1,128)}', space=vmem, size = 0x12000, scoped, tag = 'internal scratch']
  %s0 = inlined_call_operand.vmem [shape: f32[16,16], index: 0, kind: input, shape index: {}]
  %s1 = inlined_call_operand.vmem [shape: bf16[5,32,16], index: 1, kind: input, shape index: {}]
  %s2 = inlined_call_operand.vmem [shape: f32[5,32,1], index: 2, kind: input, shape index: {}]
  %s3 = inlined_call_operand.vmem [shape: bf16[5,32,32], index: 3, kind: input, shape index: {}]
  %s4 = inlined_call_operand.vmem [shape: f32[5,32,1], index: 4, kind: input, shape index: {}]
  %s5 = inlined_call_operand.vmem [shape: bf16[5,16,32], index: 5, kind: input, shape index: {}]
  %s6 = inlined_call_operand.vmem [shape: f32[5,16,1], index: 6, kind: input, shape index: {}]
  %s7 = inlined_call_operand.vmem [shape: bf16[5,16,32], index: 7, kind: input, shape index: {}]
  %s8 = inlined_call_operand.vmem [shape: f32[5,16,1], index: 8, kind: input, shape index: {}]
  %s9 = inlined_call_operand.vmem [shape: f32[5,16,1], index: 9, kind: input, shape index: {}]
  %s10 = inlined_call_operand.vmem [shape: f32[5,16,1], index: 10, kind: input, shape index: {}]
  %s11 = inlined_call_operand.hbm [shape: f32[16,16], index: 11, kind: output, shape index: {0}]
  %s12 = inlined_call_operand.hbm [shape: f32[1,16], index: 12, kind: output, shape index: {1}]
  %13 = xla_tuple %s11, %s12
  %s14 = sld [smem:[#allocation0]]
  $region62: #{tpu_custom_call.1} parent=0
    _
  %s16 = ssub.s32 1, %s14
  %s17 = scalar_select 0, %s16, %s14
  $region1: #{tpu_custom_call.1} parent=0
    #allocation2 [shape = 'u8[8192]{0}', space=vmem, size = 0x2000, scoped, tag = 'output window, operand 0, single buffered']
    #allocation3 [shape = 's32[1]{0}', space=sflag, size = 0x4, scoped, tag = 'scoped memory for tpu_custom_call.1']
    #allocation4 [shape = 'u8[512]{0}', space=vmem, size = 0x400, scoped, tag = 'output window, operand 1, single buffered']
    #allocation5 [shape = 's32[1]{0}', space=sflag, size = 0x4, scoped, tag = 'scoped memory for tpu_custom_call.1']
    %18 = vsyncpa [#allocation3], 0
    %19 = vsyncpa [#allocation5], 0
    // Predicated region
    $region2: #{tpu_custom_call.1} parent=1 // pred_check
      _
    $region3: #{tpu_custom_call.1} parent=1 // pred_check_branch
      %21 = sbr.rel (0) target = $region5
    $region4: #{tpu_custom_call.1} parent=1 // pred_region
      _
    $region5: #{tpu_custom_call.1} parent=1 // pred_fallthru
      _
    // Predicated region
    $region6: #{tpu_custom_call.1} parent=1 // pred_check
      _
    $region7: #{tpu_custom_call.1} parent=1 // pred_check_branch
      %23 = sbr.rel (0) target = $region9
    $region8: #{tpu_custom_call.1} parent=1 // pred_region
      _
    $region9: #{tpu_custom_call.1} parent=1 // pred_fallthru
      _
    // Predicated region
    $region10: #{tpu_custom_call.1} parent=1 // pred_check
      _
    $region11: #{tpu_custom_call.1} parent=1 // pred_check_branch
      %25 = sbr.rel (0) target = $region13
    $region12: #{tpu_custom_call.1} parent=1 // pred_region
      _
    $region13: #{tpu_custom_call.1} parent=1 // pred_fallthru
      _
    // Predicated region
    $region14: #{tpu_custom_call.1} parent=1 // pred_check
      _
    $region15: #{tpu_custom_call.1} parent=1 // pred_check_branch
      %27 = sbr.rel (0) target = $region17
    $region16: #{tpu_custom_call.1} parent=1 // pred_region
      _
    $region17: #{tpu_custom_call.1} parent=1 // pred_fallthru
      _
    // Predicated region
    $region18: #{tpu_custom_call.1} parent=1 // pred_check
      _
    $region19: #{tpu_custom_call.1} parent=1 // pred_check_branch
      %29 = sbr.rel (0) target = $region21
    $region20: #{tpu_custom_call.1} parent=1 // pred_region
      _
    $region21: #{tpu_custom_call.1} parent=1 // pred_fallthru
      _
    // Predicated region
    $region22: #{tpu_custom_call.1} parent=1 // pred_check
      _
    $region23: #{tpu_custom_call.1} parent=1 // pred_check_branch
      %31 = sbr.rel (0) target = $region25
    $region24: #{tpu_custom_call.1} parent=1 // pred_region
      _
    $region25: #{tpu_custom_call.1} parent=1 // pred_fallthru
      _
    // Predicated region
    $region26: #{tpu_custom_call.1} parent=1 // pred_check
      _
    $region27: #{tpu_custom_call.1} parent=1 // pred_check_branch
      %33 = sbr.rel (0) target = $region29
    $region28: #{tpu_custom_call.1} parent=1 // pred_region
      _
    $region29: #{tpu_custom_call.1} parent=1 // pred_fallthru
      _
    // Predicated region
    $region30: #{tpu_custom_call.1} parent=1 // pred_check
      _
    $region31: #{tpu_custom_call.1} parent=1 // pred_check_branch
      %35 = sbr.rel (0) target = $region33
    $region32: #{tpu_custom_call.1} parent=1 // pred_region
      _
    $region33: #{tpu_custom_call.1} parent=1 // pred_fallthru
      _
    // Predicated region
    $region34: #{tpu_custom_call.1} parent=1 // pred_check
      _
    $region35: #{tpu_custom_call.1} parent=1 // pred_check_branch
      %37 = sbr.rel (0) target = $region37
    $region36: #{tpu_custom_call.1} parent=1 // pred_region
      _
    $region37: #{tpu_custom_call.1} parent=1 // pred_fallthru
      _
    // Predicated region
    $region38: #{tpu_custom_call.1} parent=1 // pred_check
      _
    $region39: #{tpu_custom_call.1} parent=1 // pred_check_branch
      %39 = sbr.rel (0) target = $region41
    $region40: #{tpu_custom_call.1} parent=1 // pred_region
      _
    $region41: #{tpu_custom_call.1} parent=1 // pred_fallthru
      _
    // Predicated region
    $region42: #{tpu_custom_call.1} parent=1 // pred_check
      _
    $region43: #{tpu_custom_call.1} parent=1 // pred_check_branch
      %41 = sbr.rel (0) target = $region45
    $region44: #{tpu_custom_call.1} parent=1 // pred_region
      _
    $region45: #{tpu_custom_call.1} parent=1 // pred_fallthru
      _
    %v43 = vld [vmem:[%s0] sm:$0xff]
    %v44 = vld [vmem:[%s0 + $0x8] sm:$0xff]
    %v45 = vpack.c.bf16 %v44, %v43
    %v46 = vld [vmem:[%s1] sm:$0xf]
    %v47 = vld [vmem:[%s1 + $0x4] sm:$0xf]
    %v48 = vld [vmem:[%s1 + $0x8] sm:$0xf]
    %v49 = vld [vmem:[%s1 + $0xc] sm:$0xf]
    %v50 = vld [vmem:[%s2] sm:$0xff]
    %v51 = vld [vmem:[%s2 + $0x8] sm:$0xff]
    %v52 = vld [vmem:[%s2 + $0x10] sm:$0xff]
    %v53 = vld [vmem:[%s2 + $0x18] sm:$0xff]
    %55 = vset.pattern.permute.xlu0 0
    %56 = vperm.xlu0 %55, %v50
    %v57 = vpop.permute.xlu0 %56
    %60 = vset.pattern.permute.xlu0 0
    %61 = vperm.xlu0 %60, %v51
    %v62 = vpop.permute.xlu0 %61
    %65 = vset.pattern.permute.xlu0 0
    %66 = vperm.xlu0 %65, %v52
    %v67 = vpop.permute.xlu0 %66
    %70 = vset.pattern.permute.xlu0 0
    %71 = vperm.xlu0 %70, %v53
    %v72 = vpop.permute.xlu0 %71
    %v78 = vunpack.c.l.b16 %v46
    %v79 = vunpack.c.l.b16 %v47
    %v80 = vunpack.c.l.b16 %v48
    %v81 = vunpack.c.l.b16 %v49
    %v82 = vpack.c.b16 %v79, %v78
    %v83 = vpack.c.b16 %v81, %v80
    %vm84 = vcmask 130048
    %v86 = vsel %vm84, %v82, 0
    %v89 = vsel %vm84, %v83, 0
    %91 = vmatprep.subr.bf16.mxu0 0
    %92 = vmatpush1.bf16.msra.mxu0 0
    %93 = vmatprep.subr.bf16.mxu0 0
    %94 = vmatpush1.bf16.msra.mxu0 0
    %95 = vmatprep.subr.bf16.mxu0 0
    %96 = vmatpush1.bf16.msra.mxu0 0
    %97 = vmatprep.subr.bf16.mxu0 0
    %98 = vmatpush1.bf16.msra.mxu0 0
    %99 = vmatprep.subr.bf16.mxu0 0
    %100 = vmatpush1.bf16.msra.mxu0 0
    %101 = vmatprep.subr.bf16.mxu0 0
    %102 = vmatpush1.bf16.msra.mxu0 0
    %103 = vmatprep.subr.bf16.mxu0 0
    %104 = vmatpush1.bf16.msra.mxu0 0
    %105 = vmatprep.subr.bf16.mxu0 0
    %106 = vmatpush1.bf16.msra.mxu0 %v45
    %107 = vmatprep.subr.bf16.mxu0 0
    %108 = vmatpush2.bf16.msra.mxu0 0
    %109 = vmatprep.subr.bf16.mxu0 0
    %110 = vmatpush2.bf16.msra.mxu0 0
    %111 = vmatprep.subr.bf16.mxu0 0
    %112 = vmatpush2.bf16.msra.mxu0 0
    %113 = vmatprep.subr.bf16.mxu0 0
    %114 = vmatpush2.bf16.msra.mxu0 0
    %115 = vmatprep.subr.bf16.mxu0 0
    %116 = vmatpush2.bf16.msra.mxu0 0
    %117 = vmatprep.subr.bf16.mxu0 0
    %118 = vmatpush2.bf16.msra.mxu0 0
    %119 = vmatprep.subr.bf16.mxu0 0
    %120 = vmatpush2.bf16.msra.mxu0 0
    %121 = vmatprep.subr.bf16.mxu0 0
    %122 = vmatpush2.bf16.msra.mxu0 0
    %123 = vmatprep.mubr.bf16.mxu0 0
    %124 = vmatmul.mubr.bf16.gmra.mxu0 %v86
    %v125 = vpop.f32.mrf.mxu0
    %v126 = vadd.f32 %v57, %v125
    %v127 = vpop.f32.mrf.mxu0
    %v128 = vpop.f32.mrf.mxu0
    %v129 = vadd.f32 %v62, %v128
    %v130 = vpop.f32.mrf.mxu0
    %131 = vmatprep.mubr.bf16.mxu0 0
    %132 = vmatmul.mubr.bf16.gmra.mxu0 %v89
    %v133 = vpop.f32.mrf.mxu0
    %v134 = vadd.f32 %v67, %v133
    %v135 = vpop.f32.mrf.mxu0
    %v136 = vpop.f32.mrf.mxu0
    %v137 = vadd.f32 %v72, %v136
    %v138 = vpop.f32.mrf.mxu0
    %139 = vdwg.mxu0
    %v140 = vtanh.pop %v126
    %v141 = vtanh.pop %v129
    %v142 = vtanh.pop %v134
    %v143 = vtanh.pop %v137
    %v144 = vpack.c.bf16 %v141, %v140
    %v145 = vpack.c.bf16 %v143, %v142
    %v146 = vld [vmem:[%s3] sm:$0xf]
    %v147 = vld [vmem:[%s3 + $0x4] sm:$0xf]
    %v148 = vld [vmem:[%s3 + $0x8] sm:$0xf]
    %v149 = vld [vmem:[%s3 + $0xc] sm:$0xf]
    %v150 = vld [vmem:[%s4] sm:$0xff]
    %v151 = vld [vmem:[%s4 + $0x8] sm:$0xff]
    %v152 = vld [vmem:[%s4 + $0x10] sm:$0xff]
    %v153 = vld [vmem:[%s4 + $0x18] sm:$0xff]
    %155 = vset.pattern.permute.xlu0 0
    %156 = vperm.xlu0 %155, %v150
    %v157 = vpop.permute.xlu0 %156
    %160 = vset.pattern.permute.xlu0 0
    %161 = vperm.xlu0 %160, %v151
    %v162 = vpop.permute.xlu0 %161
    %165 = vset.pattern.permute.xlu0 0
    %166 = vperm.xlu0 %165, %v152
    %v167 = vpop.permute.xlu0 %166
    %170 = vset.pattern.permute.xlu0 0
    %171 = vperm.xlu0 %170, %v153
    %v172 = vpop.permute.xlu0 %171
    %v178 = vunpack.c.l.b16 %v146
    %v179 = vunpack.c.l.b16 %v147
    %v180 = vunpack.c.l.b16 %v148
    %v181 = vunpack.c.l.b16 %v149
    %v182 = vpack.c.b16 %v179, %v178
    %v183 = vpack.c.b16 %v181, %v180
    %vm184 = vcmask 261120
    %v186 = vsel %vm184, %v182, 0
    %v189 = vsel %vm184, %v183, 0
    %191 = vmatprep.subr.bf16.mxu0 0
    %192 = vmatpush1.bf16.msra.mxu0 0
    %193 = vmatprep.subr.bf16.mxu0 0
    %194 = vmatpush1.bf16.msra.mxu0 0
    %195 = vmatprep.subr.bf16.mxu0 0
    %196 = vmatpush1.bf16.msra.mxu0 0
    %197 = vmatprep.subr.bf16.mxu0 0
    %198 = vmatpush1.bf16.msra.mxu0 0
    %199 = vmatprep.subr.bf16.mxu0 0
    %200 = vmatpush1.bf16.msra.mxu0 0
    %201 = vmatprep.subr.bf16.mxu0 0
    %202 = vmatpush1.bf16.msra.mxu0 0
    %203 = vmatprep.subr.bf16.mxu0 0
    %204 = vmatpush1.bf16.msra.mxu0 %v145
    %205 = vmatprep.subr.bf16.mxu0 0
    %206 = vmatpush1.bf16.msra.mxu0 %v144
    %207 = vmatprep.subr.bf16.mxu0 0
    %208 = vmatpush2.bf16.msra.mxu0 0
    %209 = vmatprep.subr.bf16.mxu0 0
    %210 = vmatpush2.bf16.msra.mxu0 0
    %211 = vmatprep.subr.bf16.mxu0 0
    %212 = vmatpush2.bf16.msra.mxu0 0
    %213 = vmatprep.subr.bf16.mxu0 0
    %214 = vmatpush2.bf16.msra.mxu0 0
    %215 = vmatprep.subr.bf16.mxu0 0
    %216 = vmatpush2.bf16.msra.mxu0 0
    %217 = vmatprep.subr.bf16.mxu0 0
    %218 = vmatpush2.bf16.msra.mxu0 0
    %219 = vmatprep.subr.bf16.mxu0 0
    %220 = vmatpush2.bf16.msra.mxu0 0
    %221 = vmatprep.subr.bf16.mxu0 0
    %222 = vmatpush2.bf16.msra.mxu0 0
    %223 = vmatprep.mubr.bf16.mxu0 0
    %224 = vmatmul.mubr.bf16.gmra.mxu0 %v186
    %v225 = vpop.f32.mrf.mxu0
    %v226 = vadd.f32 %v157, %v225
    %v227 = vpop.f32.mrf.mxu0
    %v228 = vpop.f32.mrf.mxu0
    %v229 = vadd.f32 %v162, %v228
    %v230 = vpop.f32.mrf.mxu0
    %231 = vmatprep.mubr.bf16.mxu0 0
    %232 = vmatmul.mubr.bf16.gmra.mxu0 %v189
    %v233 = vpop.f32.mrf.mxu0
    %v234 = vadd.f32 %v167, %v233
    %v235 = vpop.f32.mrf.mxu0
    %v236 = vpop.f32.mrf.mxu0
    %v237 = vadd.f32 %v172, %v236
    %v238 = vpop.f32.mrf.mxu0
    %239 = vdwg.mxu0
    %v240 = vtanh.pop %v226
    %v241 = vtanh.pop %v229
    %v242 = vtanh.pop %v234
    %v243 = vtanh.pop %v237
    %v244 = vpack.c.bf16 %v241, %v240
    %v245 = vpack.c.bf16 %v243, %v242
    %v246 = vld [vmem:[%s5] sm:$0xf]
    %v247 = vld [vmem:[%s5 + $0x4] sm:$0xf]
    %v248 = vld [vmem:[%s6] sm:$0xff]
    %v249 = vld [vmem:[%s6 + $0x8] sm:$0xff]
    %251 = vset.pattern.permute.xlu0 0
    %252 = vperm.xlu0 %251, %v248
    %v253 = vpop.permute.xlu0 %252
    %256 = vset.pattern.permute.xlu0 0
    %257 = vperm.xlu0 %256, %v249
    %v258 = vpop.permute.xlu0 %257
    %v262 = vunpack.c.l.b16 %v246
    %v263 = vunpack.c.l.b16 %v247
    %v264 = vpack.c.b16 %v263, %v262
    %v266 = vsel %vm184, %v264, 0
    %268 = vmatprep.subr.bf16.mxu0 0
    %269 = vmatpush1.bf16.msra.mxu0 0
    %270 = vmatprep.subr.bf16.mxu0 0
    %271 = vmatpush1.bf16.msra.mxu0 0
    %272 = vmatprep.subr.bf16.mxu0 0
    %273 = vmatpush1.bf16.msra.mxu0 0
    %274 = vmatprep.subr.bf16.mxu0 0
    %275 = vmatpush1.bf16.msra.mxu0 0
    %276 = vmatprep.subr.bf16.mxu0 0
    %277 = vmatpush1.bf16.msra.mxu0 0
    %278 = vmatprep.subr.bf16.mxu0 0
    %279 = vmatpush1.bf16.msra.mxu0 0
    %280 = vmatprep.subr.bf16.mxu0 0
    %281 = vmatpush1.bf16.msra.mxu0 %v245
    %282 = vmatprep.subr.bf16.mxu0 0
    %283 = vmatpush1.bf16.msra.mxu0 %v244
    %284 = vmatprep.subr.bf16.mxu0 0
    %285 = vmatpush2.bf16.msra.mxu0 0
    %286 = vmatprep.subr.bf16.mxu0 0
    %287 = vmatpush2.bf16.msra.mxu0 0
    %288 = vmatprep.subr.bf16.mxu0 0
    %289 = vmatpush2.bf16.msra.mxu0 0
    %290 = vmatprep.subr.bf16.mxu0 0
    %291 = vmatpush2.bf16.msra.mxu0 0
    %292 = vmatprep.subr.bf16.mxu0 0
    %293 = vmatpush2.bf16.msra.mxu0 0
    %294 = vmatprep.subr.bf16.mxu0 0
    %295 = vmatpush2.bf16.msra.mxu0 0
    %296 = vmatprep.subr.bf16.mxu0 0
    %297 = vmatpush2.bf16.msra.mxu0 0
    %298 = vmatprep.subr.bf16.mxu0 0
    %299 = vmatpush2.bf16.msra.mxu0 0
    %300 = vmatprep.mubr.bf16.mxu0 0
    %301 = vmatmul.mubr.bf16.gmra.mxu0 %v266
    %v302 = vpop.f32.mrf.mxu0
    %v303 = vadd.f32 %v253, %v302
    %v304 = vpop.f32.mrf.mxu0
    %v305 = vpop.f32.mrf.mxu0
    %v306 = vadd.f32 %v258, %v305
    %v307 = vpop.f32.mrf.mxu0
    %308 = vdwg.mxu0
    %v309 = vld [vmem:[%s7] sm:$0xf]
    %v310 = vld [vmem:[%s7 + $0x4] sm:$0xf]
    %v311 = vld [vmem:[%s8] sm:$0xff]
    %v312 = vld [vmem:[%s8 + $0x8] sm:$0xff]
    %314 = vset.pattern.permute.xlu0 0
    %315 = vperm.xlu0 %314, %v311
    %v316 = vpop.permute.xlu0 %315
    %319 = vset.pattern.permute.xlu0 0
    %320 = vperm.xlu0 %319, %v312
    %v321 = vpop.permute.xlu0 %320
    %v325 = vunpack.c.l.b16 %v309
    %v326 = vunpack.c.l.b16 %v310
    %v327 = vpack.c.b16 %v326, %v325
    %v329 = vsel %vm184, %v327, 0
    %331 = vmatprep.subr.bf16.mxu0 0
    %332 = vmatpush1.bf16.msra.mxu0 0
    %333 = vmatprep.subr.bf16.mxu0 0
    %334 = vmatpush1.bf16.msra.mxu0 0
    %335 = vmatprep.subr.bf16.mxu0 0
    %336 = vmatpush1.bf16.msra.mxu0 0
    %337 = vmatprep.subr.bf16.mxu0 0
    %338 = vmatpush1.bf16.msra.mxu0 0
    %339 = vmatprep.subr.bf16.mxu0 0
    %340 = vmatpush1.bf16.msra.mxu0 0
    %341 = vmatprep.subr.bf16.mxu0 0
    %342 = vmatpush1.bf16.msra.mxu0 0
    %343 = vmatprep.subr.bf16.mxu0 0
    %344 = vmatpush1.bf16.msra.mxu0 %v245
    %345 = vmatprep.subr.bf16.mxu0 0
    %346 = vmatpush1.bf16.msra.mxu0 %v244
    %347 = vmatprep.subr.bf16.mxu0 0
    %348 = vmatpush2.bf16.msra.mxu0 0
    %349 = vmatprep.subr.bf16.mxu0 0
    %350 = vmatpush2.bf16.msra.mxu0 0
    %351 = vmatprep.subr.bf16.mxu0 0
    %352 = vmatpush2.bf16.msra.mxu0 0
    %353 = vmatprep.subr.bf16.mxu0 0
    %354 = vmatpush2.bf16.msra.mxu0 0
    %355 = vmatprep.subr.bf16.mxu0 0
    %356 = vmatpush2.bf16.msra.mxu0 0
    %357 = vmatprep.subr.bf16.mxu0 0
    %358 = vmatpush2.bf16.msra.mxu0 0
    %359 = vmatprep.subr.bf16.mxu0 0
    %360 = vmatpush2.bf16.msra.mxu0 0
    %361 = vmatprep.subr.bf16.mxu0 0
    %362 = vmatpush2.bf16.msra.mxu0 0
    %363 = vmatprep.mubr.bf16.mxu0 0
    %364 = vmatmul.mubr.bf16.gmra.mxu0 %v329
    %v365 = vpop.f32.mrf.mxu0
    %v366 = vadd.f32 %v316, %v365
    %v367 = vpop.f32.mrf.mxu0
    %v368 = vpop.f32.mrf.mxu0
    %v369 = vadd.f32 %v321, %v368
    %v370 = vpop.f32.mrf.mxu0
    %371 = vdwg.mxu0
    %v372 = vsub.f32 %v43, %v303
    %v373 = vsub.f32 %v44, %v306
    %v374 = vsub.f32 0.0, %v366
    %v375 = vsub.f32 0.0, %v369
    %v376 = vmul.f32 %v374, 1.442695
    %v377 = vpow.pop %v376
    %v378 = vmul.f32 %v375, 1.442695
    %v379 = vpow.pop %v378
    %v380 = vmul.f32 %v372, %v377
    %v381 = vmul.f32 %v373, %v379
    %v382 = vadd.f32 %v366, %v369
    %v383 = vrot.slane %v382, 4
    %v384 = vadd.f32 %v382, %v383
    %v385 = vrot.slane %v384, 2
    %v386 = vadd.f32 %v384, %v385
    %v387 = vrot.slane %v386, 1
    %v388 = vadd.f32 %v386, %v387
    %v389 = vsub.f32 0.0, %v388
    %v390 = vld [vmem:[%s9] sm:$0xff]
    %v391 = vld [vmem:[%s9 + $0x8] sm:$0xff]
    %393 = vset.pattern.permute.xlu0 0
    %394 = vperm.xlu0 %393, %v390
    %v395 = vpop.permute.xlu0 %394
    %398 = vset.pattern.permute.xlu0 0
    %399 = vperm.xlu0 %398, %v391
    %v400 = vpop.permute.xlu0 %399
    %v402 = vmul.f32 %v380, %v395
    %v403 = vmul.f32 %v381, %v400
    %v404 = vld [vmem:[%s10] sm:$0xff]
    %v405 = vld [vmem:[%s10 + $0x8] sm:$0xff]
    %407 = vset.pattern.permute.xlu0 0
    %408 = vperm.xlu0 %407, %v404
    %v409 = vpop.permute.xlu0 %408
    %412 = vset.pattern.permute.xlu0 0
    %413 = vperm.xlu0 %412, %v405
    %v414 = vpop.permute.xlu0 %413
    %v416 = vadd.f32 %v402, %v409
    %v417 = vadd.f32 %v403, %v414
    %v418 = vpack.c.bf16 %v417, %v416
    %s419 = scalar_lea.vmem %s1, 16
    %v420 = vld [vmem:[%s419] sm:$0xf]
    %v421 = vld [vmem:[%s419 + $0x4] sm:$0xf]
    %v422 = vld [vmem:[%s419 + $0x8] sm:$0xf]
    %v423 = vld [vmem:[%s419 + $0xc] sm:$0xf]
    %s424 = scalar_lea.vmem %s2, 32
    %v425 = vld [vmem:[%s424] sm:$0xff]
    %v426 = vld [vmem:[%s424 + $0x8] sm:$0xff]
    %v427 = vld [vmem:[%s424 + $0x10] sm:$0xff]
    %v428 = vld [vmem:[%s424 + $0x18] sm:$0xff]
    %430 = vset.pattern.permute.xlu0 0
    %431 = vperm.xlu0 %430, %v425
    %v432 = vpop.permute.xlu0 %431
    %435 = vset.pattern.permute.xlu0 0
    %436 = vperm.xlu0 %435, %v426
    %v437 = vpop.permute.xlu0 %436
    %440 = vset.pattern.permute.xlu0 0
    %441 = vperm.xlu0 %440, %v427
    %v442 = vpop.permute.xlu0 %441
    %445 = vset.pattern.permute.xlu0 0
    %446 = vperm.xlu0 %445, %v428
    %v447 = vpop.permute.xlu0 %446
    %v453 = vunpack.c.l.b16 %v420
    %v454 = vunpack.c.l.b16 %v421
    %v455 = vunpack.c.l.b16 %v422
    %v456 = vunpack.c.l.b16 %v423
    %v457 = vpack.c.b16 %v454, %v453
    %v458 = vpack.c.b16 %v456, %v455
    %v460 = vsel %vm84, %v457, 0
    %v463 = vsel %vm84, %v458, 0
    %465 = vmatprep.subr.bf16.mxu0 0
    %466 = vmatpush1.bf16.msra.mxu0 0
    %467 = vmatprep.subr.bf16.mxu0 0
    %468 = vmatpush1.bf16.msra.mxu0 0
    %469 = vmatprep.subr.bf16.mxu0 0
    %470 = vmatpush1.bf16.msra.mxu0 0
    %471 = vmatprep.subr.bf16.mxu0 0
    %472 = vmatpush1.bf16.msra.mxu0 0
    %473 = vmatprep.subr.bf16.mxu0 0
    %474 = vmatpush1.bf16.msra.mxu0 0
    %475 = vmatprep.subr.bf16.mxu0 0
    %476 = vmatpush1.bf16.msra.mxu0 0
    %477 = vmatprep.subr.bf16.mxu0 0
    %478 = vmatpush1.bf16.msra.mxu0 0
    %479 = vmatprep.subr.bf16.mxu0 0
    %480 = vmatpush1.bf16.msra.mxu0 %v418
    %481 = vmatprep.subr.bf16.mxu0 0
    %482 = vmatpush2.bf16.msra.mxu0 0
    %483 = vmatprep.subr.bf16.mxu0 0
    %484 = vmatpush2.bf16.msra.mxu0 0
    %485 = vmatprep.subr.bf16.mxu0 0
    %486 = vmatpush2.bf16.msra.mxu0 0
    %487 = vmatprep.subr.bf16.mxu0 0
    %488 = vmatpush2.bf16.msra.mxu0 0
    %489 = vmatprep.subr.bf16.mxu0 0
    %490 = vmatpush2.bf16.msra.mxu0 0
    %491 = vmatprep.subr.bf16.mxu0 0
    %492 = vmatpush2.bf16.msra.mxu0 0
    %493 = vmatprep.subr.bf16.mxu0 0
    %494 = vmatpush2.bf16.msra.mxu0 0
    %495 = vmatprep.subr.bf16.mxu0 0
    %496 = vmatpush2.bf16.msra.mxu0 0
    %497 = vmatprep.mubr.bf16.mxu0 0
    %498 = vmatmul.mubr.bf16.gmra.mxu0 %v460
    %v499 = vpop.f32.mrf.mxu0
    %v500 = vadd.f32 %v432, %v499
    %v501 = vpop.f32.mrf.mxu0
    %v502 = vpop.f32.mrf.mxu0
    %v503 = vadd.f32 %v437, %v502
    %v504 = vpop.f32.mrf.mxu0
    %505 = vmatprep.mubr.bf16.mxu0 0
    %506 = vmatmul.mubr.bf16.gmra.mxu0 %v463
    %v507 = vpop.f32.mrf.mxu0
    %v508 = vadd.f32 %v442, %v507
    %v509 = vpop.f32.mrf.mxu0
    %v510 = vpop.f32.mrf.mxu0
    %v511 = vadd.f32 %v447, %v510
    %v512 = vpop.f32.mrf.mxu0
    %513 = vdwg.mxu0
    %v514 = vtanh.pop %v500
    %v515 = vtanh.pop %v503
    %v516 = vtanh.pop %v508
    %v517 = vtanh.pop %v511
    %v518 = vpack.c.bf16 %v515, %v514
    %v519 = vpack.c.bf16 %v517, %v516
    %s520 = scalar_lea.vmem %s3, 16
    %v521 = vld [vmem:[%s520] sm:$0xf]
    %v522 = vld [vmem:[%s520 + $0x4] sm:$0xf]
    %v523 = vld [vmem:[%s520 + $0x8] sm:$0xf]
    %v524 = vld [vmem:[%s520 + $0xc] sm:$0xf]
    %s525 = scalar_lea.vmem %s4, 32
    %v526 = vld [vmem:[%s525] sm:$0xff]
    %v527 = vld [vmem:[%s525 + $0x8] sm:$0xff]
    %v528 = vld [vmem:[%s525 + $0x10] sm:$0xff]
    %v529 = vld [vmem:[%s525 + $0x18] sm:$0xff]
    %531 = vset.pattern.permute.xlu0 0
    %532 = vperm.xlu0 %531, %v526
    %v533 = vpop.permute.xlu0 %532
    %536 = vset.pattern.permute.xlu0 0
    %537 = vperm.xlu0 %536, %v527
    %v538 = vpop.permute.xlu0 %537
    %541 = vset.pattern.permute.xlu0 0
    %542 = vperm.xlu0 %541, %v528
    %v543 = vpop.permute.xlu0 %542
    %546 = vset.pattern.permute.xlu0 0
    %547 = vperm.xlu0 %546, %v529
    %v548 = vpop.permute.xlu0 %547
    %v554 = vunpack.c.l.b16 %v521
    %v555 = vunpack.c.l.b16 %v522
    %v556 = vunpack.c.l.b16 %v523
    %v557 = vunpack.c.l.b16 %v524
    %v558 = vpack.c.b16 %v555, %v554
    %v559 = vpack.c.b16 %v557, %v556
    %v561 = vsel %vm184, %v558, 0
    %v564 = vsel %vm184, %v559, 0
    %566 = vmatprep.subr.bf16.mxu0 0
    %567 = vmatpush1.bf16.msra.mxu0 0
    %568 = vmatprep.subr.bf16.mxu0 0
    %569 = vmatpush1.bf16.msra.mxu0 0
    %570 = vmatprep.subr.bf16.mxu0 0
    %571 = vmatpush1.bf16.msra.mxu0 0
    %572 = vmatprep.subr.bf16.mxu0 0
    %573 = vmatpush1.bf16.msra.mxu0 0
    %574 = vmatprep.subr.bf16.mxu0 0
    %575 = vmatpush1.bf16.msra.mxu0 0
    %576 = vmatprep.subr.bf16.mxu0 0
    %577 = vmatpush1.bf16.msra.mxu0 0
    %578 = vmatprep.subr.bf16.mxu0 0
    %579 = vmatpush1.bf16.msra.mxu0 %v519
    %580 = vmatprep.subr.bf16.mxu0 0
    %581 = vmatpush1.bf16.msra.mxu0 %v518
    %582 = vmatprep.subr.bf16.mxu0 0
    %583 = vmatpush2.bf16.msra.mxu0 0
    %584 = vmatprep.subr.bf16.mxu0 0
    %585 = vmatpush2.bf16.msra.mxu0 0
    %586 = vmatprep.subr.bf16.mxu0 0
    %587 = vmatpush2.bf16.msra.mxu0 0
    %588 = vmatprep.subr.bf16.mxu0 0
    %589 = vmatpush2.bf16.msra.mxu0 0
    %590 = vmatprep.subr.bf16.mxu0 0
    %591 = vmatpush2.bf16.msra.mxu0 0
    %592 = vmatprep.subr.bf16.mxu0 0
    %593 = vmatpush2.bf16.msra.mxu0 0
    %594 = vmatprep.subr.bf16.mxu0 0
    %595 = vmatpush2.bf16.msra.mxu0 0
    %596 = vmatprep.subr.bf16.mxu0 0
    %597 = vmatpush2.bf16.msra.mxu0 0
    %598 = vmatprep.mubr.bf16.mxu0 0
    %599 = vmatmul.mubr.bf16.gmra.mxu0 %v561
    %v600 = vpop.f32.mrf.mxu0
    %v601 = vadd.f32 %v533, %v600
    %v602 = vpop.f32.mrf.mxu0
    %v603 = vpop.f32.mrf.mxu0
    %v604 = vadd.f32 %v538, %v603
    %v605 = vpop.f32.mrf.mxu0
    %606 = vmatprep.mubr.bf16.mxu0 0
    %607 = vmatmul.mubr.bf16.gmra.mxu0 %v564
    %v608 = vpop.f32.mrf.mxu0
    %v609 = vadd.f32 %v543, %v608
    %v610 = vpop.f32.mrf.mxu0
    %v611 = vpop.f32.mrf.mxu0
    %v612 = vadd.f32 %v548, %v611
    %v613 = vpop.f32.mrf.mxu0
    %614 = vdwg.mxu0
    %v615 = vtanh.pop %v601
    %v616 = vtanh.pop %v604
    %v617 = vtanh.pop %v609
    %v618 = vtanh.pop %v612
    %v619 = vpack.c.bf16 %v616, %v615
    %v620 = vpack.c.bf16 %v618, %v617
    %s621 = scalar_lea.vmem %s5, 8
    %v622 = vld [vmem:[%s621] sm:$0xf]
    %v623 = vld [vmem:[%s621 + $0x4] sm:$0xf]
    %s624 = scalar_lea.vmem %s6, 16
    %v625 = vld [vmem:[%s624] sm:$0xff]
    %v626 = vld [vmem:[%s624 + $0x8] sm:$0xff]
    %628 = vset.pattern.permute.xlu0 0
    %629 = vperm.xlu0 %628, %v625
    %v630 = vpop.permute.xlu0 %629
    %633 = vset.pattern.permute.xlu0 0
    %634 = vperm.xlu0 %633, %v626
    %v635 = vpop.permute.xlu0 %634
    %v639 = vunpack.c.l.b16 %v622
    %v640 = vunpack.c.l.b16 %v623
    %v641 = vpack.c.b16 %v640, %v639
    %v643 = vsel %vm184, %v641, 0
    %645 = vmatprep.subr.bf16.mxu0 0
    %646 = vmatpush1.bf16.msra.mxu0 0
    %647 = vmatprep.subr.bf16.mxu0 0
    %648 = vmatpush1.bf16.msra.mxu0 0
    %649 = vmatprep.subr.bf16.mxu0 0
    %650 = vmatpush1.bf16.msra.mxu0 0
    %651 = vmatprep.subr.bf16.mxu0 0
    %652 = vmatpush1.bf16.msra.mxu0 0
    %653 = vmatprep.subr.bf16.mxu0 0
    %654 = vmatpush1.bf16.msra.mxu0 0
    %655 = vmatprep.subr.bf16.mxu0 0
    %656 = vmatpush1.bf16.msra.mxu0 0
    %657 = vmatprep.subr.bf16.mxu0 0
    %658 = vmatpush1.bf16.msra.mxu0 %v620
    %659 = vmatprep.subr.bf16.mxu0 0
    %660 = vmatpush1.bf16.msra.mxu0 %v619
    %661 = vmatprep.subr.bf16.mxu0 0
    %662 = vmatpush2.bf16.msra.mxu0 0
    %663 = vmatprep.subr.bf16.mxu0 0
    %664 = vmatpush2.bf16.msra.mxu0 0
    %665 = vmatprep.subr.bf16.mxu0 0
    %666 = vmatpush2.bf16.msra.mxu0 0
    %667 = vmatprep.subr.bf16.mxu0 0
    %668 = vmatpush2.bf16.msra.mxu0 0
    %669 = vmatprep.subr.bf16.mxu0 0
    %670 = vmatpush2.bf16.msra.mxu0 0
    %671 = vmatprep.subr.bf16.mxu0 0
    %672 = vmatpush2.bf16.msra.mxu0 0
    %673 = vmatprep.subr.bf16.mxu0 0
    %674 = vmatpush2.bf16.msra.mxu0 0
    %675 = vmatprep.subr.bf16.mxu0 0
    %676 = vmatpush2.bf16.msra.mxu0 0
    %677 = vmatprep.mubr.bf16.mxu0 0
    %678 = vmatmul.mubr.bf16.gmra.mxu0 %v643
    %v679 = vpop.f32.mrf.mxu0
    %v680 = vadd.f32 %v630, %v679
    %v681 = vpop.f32.mrf.mxu0
    %v682 = vpop.f32.mrf.mxu0
    %v683 = vadd.f32 %v635, %v682
    %v684 = vpop.f32.mrf.mxu0
    %685 = vdwg.mxu0
    %s686 = scalar_lea.vmem %s7, 8
    %v687 = vld [vmem:[%s686] sm:$0xf]
    %v688 = vld [vmem:[%s686 + $0x4] sm:$0xf]
    %s689 = scalar_lea.vmem %s8, 16
    %v690 = vld [vmem:[%s689] sm:$0xff]
    %v691 = vld [vmem:[%s689 + $0x8] sm:$0xff]
    %693 = vset.pattern.permute.xlu0 0
    %694 = vperm.xlu0 %693, %v690
    %v695 = vpop.permute.xlu0 %694
    %698 = vset.pattern.permute.xlu0 0
    %699 = vperm.xlu0 %698, %v691
    %v700 = vpop.permute.xlu0 %699
    %v704 = vunpack.c.l.b16 %v687
    %v705 = vunpack.c.l.b16 %v688
    %v706 = vpack.c.b16 %v705, %v704
    %v708 = vsel %vm184, %v706, 0
    %710 = vmatprep.subr.bf16.mxu0 0
    %711 = vmatpush1.bf16.msra.mxu0 0
    %712 = vmatprep.subr.bf16.mxu0 0
    %713 = vmatpush1.bf16.msra.mxu0 0
    %714 = vmatprep.subr.bf16.mxu0 0
    %715 = vmatpush1.bf16.msra.mxu0 0
    %716 = vmatprep.subr.bf16.mxu0 0
    %717 = vmatpush1.bf16.msra.mxu0 0
    %718 = vmatprep.subr.bf16.mxu0 0
    %719 = vmatpush1.bf16.msra.mxu0 0
    %720 = vmatprep.subr.bf16.mxu0 0
    %721 = vmatpush1.bf16.msra.mxu0 0
    %722 = vmatprep.subr.bf16.mxu0 0
    %723 = vmatpush1.bf16.msra.mxu0 %v620
    %724 = vmatprep.subr.bf16.mxu0 0
    %725 = vmatpush1.bf16.msra.mxu0 %v619
    %726 = vmatprep.subr.bf16.mxu0 0
    %727 = vmatpush2.bf16.msra.mxu0 0
    %728 = vmatprep.subr.bf16.mxu0 0
    %729 = vmatpush2.bf16.msra.mxu0 0
    %730 = vmatprep.subr.bf16.mxu0 0
    %731 = vmatpush2.bf16.msra.mxu0 0
    %732 = vmatprep.subr.bf16.mxu0 0
    %733 = vmatpush2.bf16.msra.mxu0 0
    %734 = vmatprep.subr.bf16.mxu0 0
    %735 = vmatpush2.bf16.msra.mxu0 0
    %736 = vmatprep.subr.bf16.mxu0 0
    %737 = vmatpush2.bf16.msra.mxu0 0
    %738 = vmatprep.subr.bf16.mxu0 0
    %739 = vmatpush2.bf16.msra.mxu0 0
    %740 = vmatprep.subr.bf16.mxu0 0
    %741 = vmatpush2.bf16.msra.mxu0 0
    %742 = vmatprep.mubr.bf16.mxu0 0
    %743 = vmatmul.mubr.bf16.gmra.mxu0 %v708
    %v744 = vpop.f32.mrf.mxu0
    %v745 = vadd.f32 %v695, %v744
    %v746 = vpop.f32.mrf.mxu0
    %v747 = vpop.f32.mrf.mxu0
    %v748 = vadd.f32 %v700, %v747
    %v749 = vpop.f32.mrf.mxu0
    %750 = vdwg.mxu0
    %v751 = vsub.f32 %v416, %v680
    %v752 = vsub.f32 %v417, %v683
    %v753 = vsub.f32 0.0, %v745
    %v754 = vsub.f32 0.0, %v748
    %v755 = vmul.f32 %v753, 1.442695
    %v756 = vpow.pop %v755
    %v757 = vmul.f32 %v754, 1.442695
    %v758 = vpow.pop %v757
    %v759 = vmul.f32 %v751, %v756
    %v760 = vmul.f32 %v752, %v758
    %v761 = vadd.f32 %v745, %v748
    %v762 = vrot.slane %v761, 4
    %v763 = vadd.f32 %v761, %v762
    %v764 = vrot.slane %v763, 2
    %v765 = vadd.f32 %v763, %v764
    %v766 = vrot.slane %v765, 1
    %v767 = vadd.f32 %v765, %v766
    %v768 = vsub.f32 %v389, %v767
    %s769 = scalar_lea.vmem %s9, 16
    %v770 = vld [vmem:[%s769] sm:$0xff]
    %v771 = vld [vmem:[%s769 + $0x8] sm:$0xff]
    %773 = vset.pattern.permute.xlu0 0
    %774 = vperm.xlu0 %773, %v770
    %v775 = vpop.permute.xlu0 %774
    %778 = vset.pattern.permute.xlu0 0
    %779 = vperm.xlu0 %778, %v771
    %v780 = vpop.permute.xlu0 %779
    %v782 = vmul.f32 %v759, %v775
    %v783 = vmul.f32 %v760, %v780
    %s784 = scalar_lea.vmem %s10, 16
    %v785 = vld [vmem:[%s784] sm:$0xff]
    %v786 = vld [vmem:[%s784 + $0x8] sm:$0xff]
    %788 = vset.pattern.permute.xlu0 0
    %789 = vperm.xlu0 %788, %v785
    %v790 = vpop.permute.xlu0 %789
    %793 = vset.pattern.permute.xlu0 0
    %794 = vperm.xlu0 %793, %v786
    %v795 = vpop.permute.xlu0 %794
    %v797 = vadd.f32 %v782, %v790
    %v798 = vadd.f32 %v783, %v795
    %v799 = vpack.c.bf16 %v798, %v797
    %s800 = scalar_lea.vmem %s1, 32
    %v801 = vld [vmem:[%s800] sm:$0xf]
    %v802 = vld [vmem:[%s800 + $0x4] sm:$0xf]
    %v803 = vld [vmem:[%s800 + $0x8] sm:$0xf]
    %v804 = vld [vmem:[%s800 + $0xc] sm:$0xf]
    %s805 = scalar_lea.vmem %s2, 64
    %v806 = vld [vmem:[%s805] sm:$0xff]
    %v807 = vld [vmem:[%s805 + $0x8] sm:$0xff]
    %v808 = vld [vmem:[%s805 + $0x10] sm:$0xff]
    %v809 = vld [vmem:[%s805 + $0x18] sm:$0xff]
    %811 = vset.pattern.permute.xlu0 0
    %812 = vperm.xlu0 %811, %v806
    %v813 = vpop.permute.xlu0 %812
    %816 = vset.pattern.permute.xlu0 0
    %817 = vperm.xlu0 %816, %v807
    %v818 = vpop.permute.xlu0 %817
    %821 = vset.pattern.permute.xlu0 0
    %822 = vperm.xlu0 %821, %v808
    %v823 = vpop.permute.xlu0 %822
    %826 = vset.pattern.permute.xlu0 0
    %827 = vperm.xlu0 %826, %v809
    %v828 = vpop.permute.xlu0 %827
    %v834 = vunpack.c.l.b16 %v801
    %v835 = vunpack.c.l.b16 %v802
    %v836 = vunpack.c.l.b16 %v803
    %v837 = vunpack.c.l.b16 %v804
    %v838 = vpack.c.b16 %v835, %v834
    %v839 = vpack.c.b16 %v837, %v836
    %v841 = vsel %vm84, %v838, 0
    %v844 = vsel %vm84, %v839, 0
    %846 = vmatprep.subr.bf16.mxu0 0
    %847 = vmatpush1.bf16.msra.mxu0 0
    %848 = vmatprep.subr.bf16.mxu0 0
    %849 = vmatpush1.bf16.msra.mxu0 0
    %850 = vmatprep.subr.bf16.mxu0 0
    %851 = vmatpush1.bf16.msra.mxu0 0
    %852 = vmatprep.subr.bf16.mxu0 0
    %853 = vmatpush1.bf16.msra.mxu0 0
    %854 = vmatprep.subr.bf16.mxu0 0
    %855 = vmatpush1.bf16.msra.mxu0 0
    %856 = vmatprep.subr.bf16.mxu0 0
    %857 = vmatpush1.bf16.msra.mxu0 0
    %858 = vmatprep.subr.bf16.mxu0 0
    %859 = vmatpush1.bf16.msra.mxu0 0
    %860 = vmatprep.subr.bf16.mxu0 0
    %861 = vmatpush1.bf16.msra.mxu0 %v799
    %862 = vmatprep.subr.bf16.mxu0 0
    %863 = vmatpush2.bf16.msra.mxu0 0
    %864 = vmatprep.subr.bf16.mxu0 0
    %865 = vmatpush2.bf16.msra.mxu0 0
    %866 = vmatprep.subr.bf16.mxu0 0
    %867 = vmatpush2.bf16.msra.mxu0 0
    %868 = vmatprep.subr.bf16.mxu0 0
    %869 = vmatpush2.bf16.msra.mxu0 0
    %870 = vmatprep.subr.bf16.mxu0 0
    %871 = vmatpush2.bf16.msra.mxu0 0
    %872 = vmatprep.subr.bf16.mxu0 0
    %873 = vmatpush2.bf16.msra.mxu0 0
    %874 = vmatprep.subr.bf16.mxu0 0
    %875 = vmatpush2.bf16.msra.mxu0 0
    %876 = vmatprep.subr.bf16.mxu0 0
    %877 = vmatpush2.bf16.msra.mxu0 0
    %878 = vmatprep.mubr.bf16.mxu0 0
    %879 = vmatmul.mubr.bf16.gmra.mxu0 %v841
    %v880 = vpop.f32.mrf.mxu0
    %v881 = vadd.f32 %v813, %v880
    %v882 = vpop.f32.mrf.mxu0
    %v883 = vpop.f32.mrf.mxu0
    %v884 = vadd.f32 %v818, %v883
    %v885 = vpop.f32.mrf.mxu0
    %886 = vmatprep.mubr.bf16.mxu0 0
    %887 = vmatmul.mubr.bf16.gmra.mxu0 %v844
    %v888 = vpop.f32.mrf.mxu0
    %v889 = vadd.f32 %v823, %v888
    %v890 = vpop.f32.mrf.mxu0
    %v891 = vpop.f32.mrf.mxu0
    %v892 = vadd.f32 %v828, %v891
    %v893 = vpop.f32.mrf.mxu0
    %894 = vdwg.mxu0
    %v895 = vtanh.pop %v881
    %v896 = vtanh.pop %v884
    %v897 = vtanh.pop %v889
    %v898 = vtanh.pop %v892
    %v899 = vpack.c.bf16 %v896, %v895
    %v900 = vpack.c.bf16 %v898, %v897
    %s901 = scalar_lea.vmem %s3, 32
    %v902 = vld [vmem:[%s901] sm:$0xf]
    %v903 = vld [vmem:[%s901 + $0x4] sm:$0xf]
    %v904 = vld [vmem:[%s901 + $0x8] sm:$0xf]
    %v905 = vld [vmem:[%s901 + $0xc] sm:$0xf]
    %s906 = scalar_lea.vmem %s4, 64
    %v907 = vld [vmem:[%s906] sm:$0xff]
    %v908 = vld [vmem:[%s906 + $0x8] sm:$0xff]
    %v909 = vld [vmem:[%s906 + $0x10] sm:$0xff]
    %v910 = vld [vmem:[%s906 + $0x18] sm:$0xff]
    %912 = vset.pattern.permute.xlu0 0
    %913 = vperm.xlu0 %912, %v907
    %v914 = vpop.permute.xlu0 %913
    %917 = vset.pattern.permute.xlu0 0
    %918 = vperm.xlu0 %917, %v908
    %v919 = vpop.permute.xlu0 %918
    %922 = vset.pattern.permute.xlu0 0
    %923 = vperm.xlu0 %922, %v909
    %v924 = vpop.permute.xlu0 %923
    %927 = vset.pattern.permute.xlu0 0
    %928 = vperm.xlu0 %927, %v910
    %v929 = vpop.permute.xlu0 %928
    %v935 = vunpack.c.l.b16 %v902
    %v936 = vunpack.c.l.b16 %v903
    %v937 = vunpack.c.l.b16 %v904
    %v938 = vunpack.c.l.b16 %v905
    %v939 = vpack.c.b16 %v936, %v935
    %v940 = vpack.c.b16 %v938, %v937
    %v942 = vsel %vm184, %v939, 0
    %v945 = vsel %vm184, %v940, 0
    %947 = vmatprep.subr.bf16.mxu0 0
    %948 = vmatpush1.bf16.msra.mxu0 0
    %949 = vmatprep.subr.bf16.mxu0 0
    %950 = vmatpush1.bf16.msra.mxu0 0
    %951 = vmatprep.subr.bf16.mxu0 0
    %952 = vmatpush1.bf16.msra.mxu0 0
    %953 = vmatprep.subr.bf16.mxu0 0
    %954 = vmatpush1.bf16.msra.mxu0 0
    %955 = vmatprep.subr.bf16.mxu0 0
    %956 = vmatpush1.bf16.msra.mxu0 0
    %957 = vmatprep.subr.bf16.mxu0 0
    %958 = vmatpush1.bf16.msra.mxu0 0
    %959 = vmatprep.subr.bf16.mxu0 0
    %960 = vmatpush1.bf16.msra.mxu0 %v900
    %961 = vmatprep.subr.bf16.mxu0 0
    %962 = vmatpush1.bf16.msra.mxu0 %v899
    %963 = vmatprep.subr.bf16.mxu0 0
    %964 = vmatpush2.bf16.msra.mxu0 0
    %965 = vmatprep.subr.bf16.mxu0 0
    %966 = vmatpush2.bf16.msra.mxu0 0
    %967 = vmatprep.subr.bf16.mxu0 0
    %968 = vmatpush2.bf16.msra.mxu0 0
    %969 = vmatprep.subr.bf16.mxu0 0
    %970 = vmatpush2.bf16.msra.mxu0 0
    %971 = vmatprep.subr.bf16.mxu0 0
    %972 = vmatpush2.bf16.msra.mxu0 0
    %973 = vmatprep.subr.bf16.mxu0 0
    %974 = vmatpush2.bf16.msra.mxu0 0
    %975 = vmatprep.subr.bf16.mxu0 0
    %976 = vmatpush2.bf16.msra.mxu0 0
    %977 = vmatprep.subr.bf16.mxu0 0
    %978 = vmatpush2.bf16.msra.mxu0 0
    %979 = vmatprep.mubr.bf16.mxu0 0
    %980 = vmatmul.mubr.bf16.gmra.mxu0 %v942
    %v981 = vpop.f32.mrf.mxu0
    %v982 = vadd.f32 %v914, %v981
    %v983 = vpop.f32.mrf.mxu0
    %v984 = vpop.f32.mrf.mxu0
    %v985 = vadd.f32 %v919, %v984
    %v986 = vpop.f32.mrf.mxu0
    %987 = vmatprep.mubr.bf16.mxu0 0
    %988 = vmatmul.mubr.bf16.gmra.mxu0 %v945
    %v989 = vpop.f32.mrf.mxu0
    %v990 = vadd.f32 %v924, %v989
    %v991 = vpop.f32.mrf.mxu0
    %v992 = vpop.f32.mrf.mxu0
    %v993 = vadd.f32 %v929, %v992
    %v994 = vpop.f32.mrf.mxu0
    %995 = vdwg.mxu0
    %v996 = vtanh.pop %v982
    %v997 = vtanh.pop %v985
    %v998 = vtanh.pop %v990
    %v999 = vtanh.pop %v993
    %v1000 = vpack.c.bf16 %v997, %v996
    %v1001 = vpack.c.bf16 %v999, %v998
    %s1002 = scalar_lea.vmem %s5, 16
    %v1003 = vld [vmem:[%s1002] sm:$0xf]
    %v1004 = vld [vmem:[%s1002 + $0x4] sm:$0xf]
    %s1005 = scalar_lea.vmem %s6, 32
    %v1006 = vld [vmem:[%s1005] sm:$0xff]
    %v1007 = vld [vmem:[%s1005 + $0x8] sm:$0xff]
    %1009 = vset.pattern.permute.xlu0 0
    %1010 = vperm.xlu0 %1009, %v1006
    %v1011 = vpop.permute.xlu0 %1010
    %1014 = vset.pattern.permute.xlu0 0
    %1015 = vperm.xlu0 %1014, %v1007
    %v1016 = vpop.permute.xlu0 %1015
    %v1020 = vunpack.c.l.b16 %v1003
    %v1021 = vunpack.c.l.b16 %v1004
    %v1022 = vpack.c.b16 %v1021, %v1020
    %v1024 = vsel %vm184, %v1022, 0
    %1026 = vmatprep.subr.bf16.mxu0 0
    %1027 = vmatpush1.bf16.msra.mxu0 0
    %1028 = vmatprep.subr.bf16.mxu0 0
    %1029 = vmatpush1.bf16.msra.mxu0 0
    %1030 = vmatprep.subr.bf16.mxu0 0
    %1031 = vmatpush1.bf16.msra.mxu0 0
    %1032 = vmatprep.subr.bf16.mxu0 0
    %1033 = vmatpush1.bf16.msra.mxu0 0
    %1034 = vmatprep.subr.bf16.mxu0 0
    %1035 = vmatpush1.bf16.msra.mxu0 0
    %1036 = vmatprep.subr.bf16.mxu0 0
    %1037 = vmatpush1.bf16.msra.mxu0 0
    %1038 = vmatprep.subr.bf16.mxu0 0
    %1039 = vmatpush1.bf16.msra.mxu0 %v1001
    %1040 = vmatprep.subr.bf16.mxu0 0
    %1041 = vmatpush1.bf16.msra.mxu0 %v1000
    %1042 = vmatprep.subr.bf16.mxu0 0
    %1043 = vmatpush2.bf16.msra.mxu0 0
    %1044 = vmatprep.subr.bf16.mxu0 0
    %1045 = vmatpush2.bf16.msra.mxu0 0
    %1046 = vmatprep.subr.bf16.mxu0 0
    %1047 = vmatpush2.bf16.msra.mxu0 0
    %1048 = vmatprep.subr.bf16.mxu0 0
    %1049 = vmatpush2.bf16.msra.mxu0 0
    %1050 = vmatprep.subr.bf16.mxu0 0
    %1051 = vmatpush2.bf16.msra.mxu0 0
    %1052 = vmatprep.subr.bf16.mxu0 0
    %1053 = vmatpush2.bf16.msra.mxu0 0
    %1054 = vmatprep.subr.bf16.mxu0 0
    %1055 = vmatpush2.bf16.msra.mxu0 0
    %1056 = vmatprep.subr.bf16.mxu0 0
    %1057 = vmatpush2.bf16.msra.mxu0 0
    %1058 = vmatprep.mubr.bf16.mxu0 0
    %1059 = vmatmul.mubr.bf16.gmra.mxu0 %v1024
    %v1060 = vpop.f32.mrf.mxu0
    %v1061 = vadd.f32 %v1011, %v1060
    %v1062 = vpop.f32.mrf.mxu0
    %v1063 = vpop.f32.mrf.mxu0
    %v1064 = vadd.f32 %v1016, %v1063
    %v1065 = vpop.f32.mrf.mxu0
    %1066 = vdwg.mxu0
    %s1067 = scalar_lea.vmem %s7, 16
    %v1068 = vld [vmem:[%s1067] sm:$0xf]
    %v1069 = vld [vmem:[%s1067 + $0x4] sm:$0xf]
    %s1070 = scalar_lea.vmem %s8, 32
    %v1071 = vld [vmem:[%s1070] sm:$0xff]
    %v1072 = vld [vmem:[%s1070 + $0x8] sm:$0xff]
    %1074 = vset.pattern.permute.xlu0 0
    %1075 = vperm.xlu0 %1074, %v1071
    %v1076 = vpop.permute.xlu0 %1075
    %1079 = vset.pattern.permute.xlu0 0
    %1080 = vperm.xlu0 %1079, %v1072
    %v1081 = vpop.permute.xlu0 %1080
    %v1085 = vunpack.c.l.b16 %v1068
    %v1086 = vunpack.c.l.b16 %v1069
    %v1087 = vpack.c.b16 %v1086, %v1085
    %v1089 = vsel %vm184, %v1087, 0
    %1091 = vmatprep.subr.bf16.mxu0 0
    %1092 = vmatpush1.bf16.msra.mxu0 0
    %1093 = vmatprep.subr.bf16.mxu0 0
    %1094 = vmatpush1.bf16.msra.mxu0 0
    %1095 = vmatprep.subr.bf16.mxu0 0
    %1096 = vmatpush1.bf16.msra.mxu0 0
    %1097 = vmatprep.subr.bf16.mxu0 0
    %1098 = vmatpush1.bf16.msra.mxu0 0
    %1099 = vmatprep.subr.bf16.mxu0 0
    %1100 = vmatpush1.bf16.msra.mxu0 0
    %1101 = vmatprep.subr.bf16.mxu0 0
    %1102 = vmatpush1.bf16.msra.mxu0 0
    %1103 = vmatprep.subr.bf16.mxu0 0
    %1104 = vmatpush1.bf16.msra.mxu0 %v1001
    %1105 = vmatprep.subr.bf16.mxu0 0
    %1106 = vmatpush1.bf16.msra.mxu0 %v1000
    %1107 = vmatprep.subr.bf16.mxu0 0
    %1108 = vmatpush2.bf16.msra.mxu0 0
    %1109 = vmatprep.subr.bf16.mxu0 0
    %1110 = vmatpush2.bf16.msra.mxu0 0
    %1111 = vmatprep.subr.bf16.mxu0 0
    %1112 = vmatpush2.bf16.msra.mxu0 0
    %1113 = vmatprep.subr.bf16.mxu0 0
    %1114 = vmatpush2.bf16.msra.mxu0 0
    %1115 = vmatprep.subr.bf16.mxu0 0
    %1116 = vmatpush2.bf16.msra.mxu0 0
    %1117 = vmatprep.subr.bf16.mxu0 0
    %1118 = vmatpush2.bf16.msra.mxu0 0
    %1119 = vmatprep.subr.bf16.mxu0 0
    %1120 = vmatpush2.bf16.msra.mxu0 0
    %1121 = vmatprep.subr.bf16.mxu0 0
    %1122 = vmatpush2.bf16.msra.mxu0 0
    %1123 = vmatprep.mubr.bf16.mxu0 0
    %1124 = vmatmul.mubr.bf16.gmra.mxu0 %v1089
    %v1125 = vpop.f32.mrf.mxu0
    %v1126 = vadd.f32 %v1076, %v1125
    %v1127 = vpop.f32.mrf.mxu0
    %v1128 = vpop.f32.mrf.mxu0
    %v1129 = vadd.f32 %v1081, %v1128
    %v1130 = vpop.f32.mrf.mxu0
    %1131 = vdwg.mxu0
    %v1132 = vsub.f32 %v797, %v1061
    %v1133 = vsub.f32 %v798, %v1064
    %v1134 = vsub.f32 0.0, %v1126
    %v1135 = vsub.f32 0.0, %v1129
    %v1136 = vmul.f32 %v1134, 1.442695
    %v1137 = vpow.pop %v1136
    %v1138 = vmul.f32 %v1135, 1.442695
    %v1139 = vpow.pop %v1138
    %v1140 = vmul.f32 %v1132, %v1137
    %v1141 = vmul.f32 %v1133, %v1139
    %v1142 = vadd.f32 %v1126, %v1129
    %v1143 = vrot.slane %v1142, 4
    %v1144 = vadd.f32 %v1142, %v1143
    %v1145 = vrot.slane %v1144, 2
    %v1146 = vadd.f32 %v1144, %v1145
    %v1147 = vrot.slane %v1146, 1
    %v1148 = vadd.f32 %v1146, %v1147
    %v1149 = vsub.f32 %v768, %v1148
    %s1150 = scalar_lea.vmem %s9, 32
    %v1151 = vld [vmem:[%s1150] sm:$0xff]
    %v1152 = vld [vmem:[%s1150 + $0x8] sm:$0xff]
    %1154 = vset.pattern.permute.xlu0 0
    %1155 = vperm.xlu0 %1154, %v1151
    %v1156 = vpop.permute.xlu0 %1155
    %1159 = vset.pattern.permute.xlu0 0
    %1160 = vperm.xlu0 %1159, %v1152
    %v1161 = vpop.permute.xlu0 %1160
    %v1163 = vmul.f32 %v1140, %v1156
    %v1164 = vmul.f32 %v1141, %v1161
    %s1165 = scalar_lea.vmem %s10, 32
    %v1166 = vld [vmem:[%s1165] sm:$0xff]
    %v1167 = vld [vmem:[%s1165 + $0x8] sm:$0xff]
    %1169 = vset.pattern.permute.xlu0 0
    %1170 = vperm.xlu0 %1169, %v1166
    %v1171 = vpop.permute.xlu0 %1170
    %1174 = vset.pattern.permute.xlu0 0
    %1175 = vperm.xlu0 %1174, %v1167
    %v1176 = vpop.permute.xlu0 %1175
    %v1178 = vadd.f32 %v1163, %v1171
    %v1179 = vadd.f32 %v1164, %v1176
    %v1180 = vpack.c.bf16 %v1179, %v1178
    %s1181 = scalar_lea.vmem %s1, 48
    %v1182 = vld [vmem:[%s1181] sm:$0xf]
    %v1183 = vld [vmem:[%s1181 + $0x4] sm:$0xf]
    %v1184 = vld [vmem:[%s1181 + $0x8] sm:$0xf]
    %v1185 = vld [vmem:[%s1181 + $0xc] sm:$0xf]
    %s1186 = scalar_lea.vmem %s2, 96
    %v1187 = vld [vmem:[%s1186] sm:$0xff]
    %v1188 = vld [vmem:[%s1186 + $0x8] sm:$0xff]
    %v1189 = vld [vmem:[%s1186 + $0x10] sm:$0xff]
    %v1190 = vld [vmem:[%s1186 + $0x18] sm:$0xff]
    %1192 = vset.pattern.permute.xlu0 0
    %1193 = vperm.xlu0 %1192, %v1187
    %v1194 = vpop.permute.xlu0 %1193
    %1197 = vset.pattern.permute.xlu0 0
    %1198 = vperm.xlu0 %1197, %v1188
    %v1199 = vpop.permute.xlu0 %1198
    %1202 = vset.pattern.permute.xlu0 0
    %1203 = vperm.xlu0 %1202, %v1189
    %v1204 = vpop.permute.xlu0 %1203
    %1207 = vset.pattern.permute.xlu0 0
    %1208 = vperm.xlu0 %1207, %v1190
    %v1209 = vpop.permute.xlu0 %1208
    %v1215 = vunpack.c.l.b16 %v1182
    %v1216 = vunpack.c.l.b16 %v1183
    %v1217 = vunpack.c.l.b16 %v1184
    %v1218 = vunpack.c.l.b16 %v1185
    %v1219 = vpack.c.b16 %v1216, %v1215
    %v1220 = vpack.c.b16 %v1218, %v1217
    %v1222 = vsel %vm84, %v1219, 0
    %v1225 = vsel %vm84, %v1220, 0
    %1227 = vmatprep.subr.bf16.mxu0 0
    %1228 = vmatpush1.bf16.msra.mxu0 0
    %1229 = vmatprep.subr.bf16.mxu0 0
    %1230 = vmatpush1.bf16.msra.mxu0 0
    %1231 = vmatprep.subr.bf16.mxu0 0
    %1232 = vmatpush1.bf16.msra.mxu0 0
    %1233 = vmatprep.subr.bf16.mxu0 0
    %1234 = vmatpush1.bf16.msra.mxu0 0
    %1235 = vmatprep.subr.bf16.mxu0 0
    %1236 = vmatpush1.bf16.msra.mxu0 0
    %1237 = vmatprep.subr.bf16.mxu0 0
    %1238 = vmatpush1.bf16.msra.mxu0 0
    %1239 = vmatprep.subr.bf16.mxu0 0
    %1240 = vmatpush1.bf16.msra.mxu0 0
    %1241 = vmatprep.subr.bf16.mxu0 0
    %1242 = vmatpush1.bf16.msra.mxu0 %v1180
    %1243 = vmatprep.subr.bf16.mxu0 0
    %1244 = vmatpush2.bf16.msra.mxu0 0
    %1245 = vmatprep.subr.bf16.mxu0 0
    %1246 = vmatpush2.bf16.msra.mxu0 0
    %1247 = vmatprep.subr.bf16.mxu0 0
    %1248 = vmatpush2.bf16.msra.mxu0 0
    %1249 = vmatprep.subr.bf16.mxu0 0
    %1250 = vmatpush2.bf16.msra.mxu0 0
    %1251 = vmatprep.subr.bf16.mxu0 0
    %1252 = vmatpush2.bf16.msra.mxu0 0
    %1253 = vmatprep.subr.bf16.mxu0 0
    %1254 = vmatpush2.bf16.msra.mxu0 0
    %1255 = vmatprep.subr.bf16.mxu0 0
    %1256 = vmatpush2.bf16.msra.mxu0 0
    %1257 = vmatprep.subr.bf16.mxu0 0
    %1258 = vmatpush2.bf16.msra.mxu0 0
    %1259 = vmatprep.mubr.bf16.mxu0 0
    %1260 = vmatmul.mubr.bf16.gmra.mxu0 %v1222
    %v1261 = vpop.f32.mrf.mxu0
    %v1262 = vadd.f32 %v1194, %v1261
    %v1263 = vpop.f32.mrf.mxu0
    %v1264 = vpop.f32.mrf.mxu0
    %v1265 = vadd.f32 %v1199, %v1264
    %v1266 = vpop.f32.mrf.mxu0
    %1267 = vmatprep.mubr.bf16.mxu0 0
    %1268 = vmatmul.mubr.bf16.gmra.mxu0 %v1225
    %v1269 = vpop.f32.mrf.mxu0
    %v1270 = vadd.f32 %v1204, %v1269
    %v1271 = vpop.f32.mrf.mxu0
    %v1272 = vpop.f32.mrf.mxu0
    %v1273 = vadd.f32 %v1209, %v1272
    %v1274 = vpop.f32.mrf.mxu0
    %1275 = vdwg.mxu0
    %v1276 = vtanh.pop %v1262
    %v1277 = vtanh.pop %v1265
    %v1278 = vtanh.pop %v1270
    %v1279 = vtanh.pop %v1273
    %v1280 = vpack.c.bf16 %v1277, %v1276
    %v1281 = vpack.c.bf16 %v1279, %v1278
    %s1282 = scalar_lea.vmem %s3, 48
    %v1283 = vld [vmem:[%s1282] sm:$0xf]
    %v1284 = vld [vmem:[%s1282 + $0x4] sm:$0xf]
    %v1285 = vld [vmem:[%s1282 + $0x8] sm:$0xf]
    %v1286 = vld [vmem:[%s1282 + $0xc] sm:$0xf]
    %s1287 = scalar_lea.vmem %s4, 96
    %v1288 = vld [vmem:[%s1287] sm:$0xff]
    %v1289 = vld [vmem:[%s1287 + $0x8] sm:$0xff]
    %v1290 = vld [vmem:[%s1287 + $0x10] sm:$0xff]
    %v1291 = vld [vmem:[%s1287 + $0x18] sm:$0xff]
    %1293 = vset.pattern.permute.xlu0 0
    %1294 = vperm.xlu0 %1293, %v1288
    %v1295 = vpop.permute.xlu0 %1294
    %1298 = vset.pattern.permute.xlu0 0
    %1299 = vperm.xlu0 %1298, %v1289
    %v1300 = vpop.permute.xlu0 %1299
    %1303 = vset.pattern.permute.xlu0 0
    %1304 = vperm.xlu0 %1303, %v1290
    %v1305 = vpop.permute.xlu0 %1304
    %1308 = vset.pattern.permute.xlu0 0
    %1309 = vperm.xlu0 %1308, %v1291
    %v1310 = vpop.permute.xlu0 %1309
    %v1316 = vunpack.c.l.b16 %v1283
    %v1317 = vunpack.c.l.b16 %v1284
    %v1318 = vunpack.c.l.b16 %v1285
    %v1319 = vunpack.c.l.b16 %v1286
    %v1320 = vpack.c.b16 %v1317, %v1316
    %v1321 = vpack.c.b16 %v1319, %v1318
    %v1323 = vsel %vm184, %v1320, 0
    %v1326 = vsel %vm184, %v1321, 0
    %1328 = vmatprep.subr.bf16.mxu0 0
    %1329 = vmatpush1.bf16.msra.mxu0 0
    %1330 = vmatprep.subr.bf16.mxu0 0
    %1331 = vmatpush1.bf16.msra.mxu0 0
    %1332 = vmatprep.subr.bf16.mxu0 0
    %1333 = vmatpush1.bf16.msra.mxu0 0
    %1334 = vmatprep.subr.bf16.mxu0 0
    %1335 = vmatpush1.bf16.msra.mxu0 0
    %1336 = vmatprep.subr.bf16.mxu0 0
    %1337 = vmatpush1.bf16.msra.mxu0 0
    %1338 = vmatprep.subr.bf16.mxu0 0
    %1339 = vmatpush1.bf16.msra.mxu0 0
    %1340 = vmatprep.subr.bf16.mxu0 0
    %1341 = vmatpush1.bf16.msra.mxu0 %v1281
    %1342 = vmatprep.subr.bf16.mxu0 0
    %1343 = vmatpush1.bf16.msra.mxu0 %v1280
    %1344 = vmatprep.subr.bf16.mxu0 0
    %1345 = vmatpush2.bf16.msra.mxu0 0
    %1346 = vmatprep.subr.bf16.mxu0 0
    %1347 = vmatpush2.bf16.msra.mxu0 0
    %1348 = vmatprep.subr.bf16.mxu0 0
    %1349 = vmatpush2.bf16.msra.mxu0 0
    %1350 = vmatprep.subr.bf16.mxu0 0
    %1351 = vmatpush2.bf16.msra.mxu0 0
    %1352 = vmatprep.subr.bf16.mxu0 0
    %1353 = vmatpush2.bf16.msra.mxu0 0
    %1354 = vmatprep.subr.bf16.mxu0 0
    %1355 = vmatpush2.bf16.msra.mxu0 0
    %1356 = vmatprep.subr.bf16.mxu0 0
    %1357 = vmatpush2.bf16.msra.mxu0 0
    %1358 = vmatprep.subr.bf16.mxu0 0
    %1359 = vmatpush2.bf16.msra.mxu0 0
    %1360 = vmatprep.mubr.bf16.mxu0 0
    %1361 = vmatmul.mubr.bf16.gmra.mxu0 %v1323
    %v1362 = vpop.f32.mrf.mxu0
    %v1363 = vadd.f32 %v1295, %v1362
    %v1364 = vpop.f32.mrf.mxu0
    %v1365 = vpop.f32.mrf.mxu0
    %v1366 = vadd.f32 %v1300, %v1365
    %v1367 = vpop.f32.mrf.mxu0
    %1368 = vmatprep.mubr.bf16.mxu0 0
    %1369 = vmatmul.mubr.bf16.gmra.mxu0 %v1326
    %v1370 = vpop.f32.mrf.mxu0
    %v1371 = vadd.f32 %v1305, %v1370
    %v1372 = vpop.f32.mrf.mxu0
    %v1373 = vpop.f32.mrf.mxu0
    %v1374 = vadd.f32 %v1310, %v1373
    %v1375 = vpop.f32.mrf.mxu0
    %1376 = vdwg.mxu0
    %v1377 = vtanh.pop %v1363
    %v1378 = vtanh.pop %v1366
    %v1379 = vtanh.pop %v1371
    %v1380 = vtanh.pop %v1374
    %v1381 = vpack.c.bf16 %v1378, %v1377
    %v1382 = vpack.c.bf16 %v1380, %v1379
    %s1383 = scalar_lea.vmem %s5, 24
    %v1384 = vld [vmem:[%s1383] sm:$0xf]
    %v1385 = vld [vmem:[%s1383 + $0x4] sm:$0xf]
    %s1386 = scalar_lea.vmem %s6, 48
    %v1387 = vld [vmem:[%s1386] sm:$0xff]
    %v1388 = vld [vmem:[%s1386 + $0x8] sm:$0xff]
    %1390 = vset.pattern.permute.xlu0 0
    %1391 = vperm.xlu0 %1390, %v1387
    %v1392 = vpop.permute.xlu0 %1391
    %1395 = vset.pattern.permute.xlu0 0
    %1396 = vperm.xlu0 %1395, %v1388
    %v1397 = vpop.permute.xlu0 %1396
    %v1401 = vunpack.c.l.b16 %v1384
    %v1402 = vunpack.c.l.b16 %v1385
    %v1403 = vpack.c.b16 %v1402, %v1401
    %v1405 = vsel %vm184, %v1403, 0
    %1407 = vmatprep.subr.bf16.mxu0 0
    %1408 = vmatpush1.bf16.msra.mxu0 0
    %1409 = vmatprep.subr.bf16.mxu0 0
    %1410 = vmatpush1.bf16.msra.mxu0 0
    %1411 = vmatprep.subr.bf16.mxu0 0
    %1412 = vmatpush1.bf16.msra.mxu0 0
    %1413 = vmatprep.subr.bf16.mxu0 0
    %1414 = vmatpush1.bf16.msra.mxu0 0
    %1415 = vmatprep.subr.bf16.mxu0 0
    %1416 = vmatpush1.bf16.msra.mxu0 0
    %1417 = vmatprep.subr.bf16.mxu0 0
    %1418 = vmatpush1.bf16.msra.mxu0 0
    %1419 = vmatprep.subr.bf16.mxu0 0
    %1420 = vmatpush1.bf16.msra.mxu0 %v1382
    %1421 = vmatprep.subr.bf16.mxu0 0
    %1422 = vmatpush1.bf16.msra.mxu0 %v1381
    %1423 = vmatprep.subr.bf16.mxu0 0
    %1424 = vmatpush2.bf16.msra.mxu0 0
    %1425 = vmatprep.subr.bf16.mxu0 0
    %1426 = vmatpush2.bf16.msra.mxu0 0
    %1427 = vmatprep.subr.bf16.mxu0 0
    %1428 = vmatpush2.bf16.msra.mxu0 0
    %1429 = vmatprep.subr.bf16.mxu0 0
    %1430 = vmatpush2.bf16.msra.mxu0 0
    %1431 = vmatprep.subr.bf16.mxu0 0
    %1432 = vmatpush2.bf16.msra.mxu0 0
    %1433 = vmatprep.subr.bf16.mxu0 0
    %1434 = vmatpush2.bf16.msra.mxu0 0
    %1435 = vmatprep.subr.bf16.mxu0 0
    %1436 = vmatpush2.bf16.msra.mxu0 0
    %1437 = vmatprep.subr.bf16.mxu0 0
    %1438 = vmatpush2.bf16.msra.mxu0 0
    %1439 = vmatprep.mubr.bf16.mxu0 0
    %1440 = vmatmul.mubr.bf16.gmra.mxu0 %v1405
    %v1441 = vpop.f32.mrf.mxu0
    %v1442 = vadd.f32 %v1392, %v1441
    %v1443 = vpop.f32.mrf.mxu0
    %v1444 = vpop.f32.mrf.mxu0
    %v1445 = vadd.f32 %v1397, %v1444
    %v1446 = vpop.f32.mrf.mxu0
    %1447 = vdwg.mxu0
    %s1448 = scalar_lea.vmem %s7, 24
    %v1449 = vld [vmem:[%s1448] sm:$0xf]
    %v1450 = vld [vmem:[%s1448 + $0x4] sm:$0xf]
    %s1451 = scalar_lea.vmem %s8, 48
    %v1452 = vld [vmem:[%s1451] sm:$0xff]
    %v1453 = vld [vmem:[%s1451 + $0x8] sm:$0xff]
    %1455 = vset.pattern.permute.xlu0 0
    %1456 = vperm.xlu0 %1455, %v1452
    %v1457 = vpop.permute.xlu0 %1456
    %1460 = vset.pattern.permute.xlu0 0
    %1461 = vperm.xlu0 %1460, %v1453
    %v1462 = vpop.permute.xlu0 %1461
    %v1466 = vunpack.c.l.b16 %v1449
    %v1467 = vunpack.c.l.b16 %v1450
    %v1468 = vpack.c.b16 %v1467, %v1466
    %v1470 = vsel %vm184, %v1468, 0
    %1472 = vmatprep.subr.bf16.mxu0 0
    %1473 = vmatpush1.bf16.msra.mxu0 0
    %1474 = vmatprep.subr.bf16.mxu0 0
    %1475 = vmatpush1.bf16.msra.mxu0 0
    %1476 = vmatprep.subr.bf16.mxu0 0
    %1477 = vmatpush1.bf16.msra.mxu0 0
    %1478 = vmatprep.subr.bf16.mxu0 0
    %1479 = vmatpush1.bf16.msra.mxu0 0
    %1480 = vmatprep.subr.bf16.mxu0 0
    %1481 = vmatpush1.bf16.msra.mxu0 0
    %1482 = vmatprep.subr.bf16.mxu0 0
    %1483 = vmatpush1.bf16.msra.mxu0 0
    %1484 = vmatprep.subr.bf16.mxu0 0
    %1485 = vmatpush1.bf16.msra.mxu0 %v1382
    %1486 = vmatprep.subr.bf16.mxu0 0
    %1487 = vmatpush1.bf16.msra.mxu0 %v1381
    %1488 = vmatprep.subr.bf16.mxu0 0
    %1489 = vmatpush2.bf16.msra.mxu0 0
    %1490 = vmatprep.subr.bf16.mxu0 0
    %1491 = vmatpush2.bf16.msra.mxu0 0
    %1492 = vmatprep.subr.bf16.mxu0 0
    %1493 = vmatpush2.bf16.msra.mxu0 0
    %1494 = vmatprep.subr.bf16.mxu0 0
    %1495 = vmatpush2.bf16.msra.mxu0 0
    %1496 = vmatprep.subr.bf16.mxu0 0
    %1497 = vmatpush2.bf16.msra.mxu0 0
    %1498 = vmatprep.subr.bf16.mxu0 0
    %1499 = vmatpush2.bf16.msra.mxu0 0
    %1500 = vmatprep.subr.bf16.mxu0 0
    %1501 = vmatpush2.bf16.msra.mxu0 0
    %1502 = vmatprep.subr.bf16.mxu0 0
    %1503 = vmatpush2.bf16.msra.mxu0 0
    %1504 = vmatprep.mubr.bf16.mxu0 0
    %1505 = vmatmul.mubr.bf16.gmra.mxu0 %v1470
    %v1506 = vpop.f32.mrf.mxu0
    %v1507 = vadd.f32 %v1457, %v1506
    %v1508 = vpop.f32.mrf.mxu0
    %v1509 = vpop.f32.mrf.mxu0
    %v1510 = vadd.f32 %v1462, %v1509
    %v1511 = vpop.f32.mrf.mxu0
    %1512 = vdwg.mxu0
    %v1513 = vsub.f32 %v1178, %v1442
    %v1514 = vsub.f32 %v1179, %v1445
    %v1515 = vsub.f32 0.0, %v1507
    %v1516 = vsub.f32 0.0, %v1510
    %v1517 = vmul.f32 %v1515, 1.442695
    %v1518 = vpow.pop %v1517
    %v1519 = vmul.f32 %v1516, 1.442695
    %v1520 = vpow.pop %v1519
    %v1521 = vmul.f32 %v1513, %v1518
    %v1522 = vmul.f32 %v1514, %v1520
    %v1523 = vadd.f32 %v1507, %v1510
    %v1524 = vrot.slane %v1523, 4
    %v1525 = vadd.f32 %v1523, %v1524
    %v1526 = vrot.slane %v1525, 2
    %v1527 = vadd.f32 %v1525, %v1526
    %v1528 = vrot.slane %v1527, 1
    %v1529 = vadd.f32 %v1527, %v1528
    %v1530 = vsub.f32 %v1149, %v1529
    %s1531 = scalar_lea.vmem %s9, 48
    %v1532 = vld [vmem:[%s1531] sm:$0xff]
    %v1533 = vld [vmem:[%s1531 + $0x8] sm:$0xff]
    %1535 = vset.pattern.permute.xlu0 0
    %1536 = vperm.xlu0 %1535, %v1532
    %v1537 = vpop.permute.xlu0 %1536
    %1540 = vset.pattern.permute.xlu0 0
    %1541 = vperm.xlu0 %1540, %v1533
    %v1542 = vpop.permute.xlu0 %1541
    %v1544 = vmul.f32 %v1521, %v1537
    %v1545 = vmul.f32 %v1522, %v1542
    %s1546 = scalar_lea.vmem %s10, 48
    %v1547 = vld [vmem:[%s1546] sm:$0xff]
    %v1548 = vld [vmem:[%s1546 + $0x8] sm:$0xff]
    %1550 = vset.pattern.permute.xlu0 0
    %1551 = vperm.xlu0 %1550, %v1547
    %v1552 = vpop.permute.xlu0 %1551
    %1555 = vset.pattern.permute.xlu0 0
    %1556 = vperm.xlu0 %1555, %v1548
    %v1557 = vpop.permute.xlu0 %1556
    %v1559 = vadd.f32 %v1544, %v1552
    %v1560 = vadd.f32 %v1545, %v1557
    %v1561 = vpack.c.bf16 %v1560, %v1559
    %s1562 = scalar_lea.vmem %s1, 64
    %v1563 = vld [vmem:[%s1562] sm:$0xf]
    %v1564 = vld [vmem:[%s1562 + $0x4] sm:$0xf]
    %v1565 = vld [vmem:[%s1562 + $0x8] sm:$0xf]
    %v1566 = vld [vmem:[%s1562 + $0xc] sm:$0xf]
    %s1567 = scalar_lea.vmem %s2, 128
    %v1568 = vld [vmem:[%s1567] sm:$0xff]
    %v1569 = vld [vmem:[%s1567 + $0x8] sm:$0xff]
    %v1570 = vld [vmem:[%s1567 + $0x10] sm:$0xff]
    %v1571 = vld [vmem:[%s1567 + $0x18] sm:$0xff]
    %1573 = vset.pattern.permute.xlu0 0
    %1574 = vperm.xlu0 %1573, %v1568
    %v1575 = vpop.permute.xlu0 %1574
    %1578 = vset.pattern.permute.xlu0 0
    %1579 = vperm.xlu0 %1578, %v1569
    %v1580 = vpop.permute.xlu0 %1579
    %1583 = vset.pattern.permute.xlu0 0
    %1584 = vperm.xlu0 %1583, %v1570
    %v1585 = vpop.permute.xlu0 %1584
    %1588 = vset.pattern.permute.xlu0 0
    %1589 = vperm.xlu0 %1588, %v1571
    %v1590 = vpop.permute.xlu0 %1589
    %v1596 = vunpack.c.l.b16 %v1563
    %v1597 = vunpack.c.l.b16 %v1564
    %v1598 = vunpack.c.l.b16 %v1565
    %v1599 = vunpack.c.l.b16 %v1566
    %v1600 = vpack.c.b16 %v1597, %v1596
    %v1601 = vpack.c.b16 %v1599, %v1598
    %v1603 = vsel %vm84, %v1600, 0
    %v1606 = vsel %vm84, %v1601, 0
    %1608 = vmatprep.subr.bf16.mxu0 0
    %1609 = vmatpush1.bf16.msra.mxu0 0
    %1610 = vmatprep.subr.bf16.mxu0 0
    %1611 = vmatpush1.bf16.msra.mxu0 0
    %1612 = vmatprep.subr.bf16.mxu0 0
    %1613 = vmatpush1.bf16.msra.mxu0 0
    %1614 = vmatprep.subr.bf16.mxu0 0
    %1615 = vmatpush1.bf16.msra.mxu0 0
    %1616 = vmatprep.subr.bf16.mxu0 0
    %1617 = vmatpush1.bf16.msra.mxu0 0
    %1618 = vmatprep.subr.bf16.mxu0 0
    %1619 = vmatpush1.bf16.msra.mxu0 0
    %1620 = vmatprep.subr.bf16.mxu0 0
    %1621 = vmatpush1.bf16.msra.mxu0 0
    %1622 = vmatprep.subr.bf16.mxu0 0
    %1623 = vmatpush1.bf16.msra.mxu0 %v1561
    %1624 = vmatprep.subr.bf16.mxu0 0
    %1625 = vmatpush2.bf16.msra.mxu0 0
    %1626 = vmatprep.subr.bf16.mxu0 0
    %1627 = vmatpush2.bf16.msra.mxu0 0
    %1628 = vmatprep.subr.bf16.mxu0 0
    %1629 = vmatpush2.bf16.msra.mxu0 0
    %1630 = vmatprep.subr.bf16.mxu0 0
    %1631 = vmatpush2.bf16.msra.mxu0 0
    %1632 = vmatprep.subr.bf16.mxu0 0
    %1633 = vmatpush2.bf16.msra.mxu0 0
    %1634 = vmatprep.subr.bf16.mxu0 0
    %1635 = vmatpush2.bf16.msra.mxu0 0
    %1636 = vmatprep.subr.bf16.mxu0 0
    %1637 = vmatpush2.bf16.msra.mxu0 0
    %1638 = vmatprep.subr.bf16.mxu0 0
    %1639 = vmatpush2.bf16.msra.mxu0 0
    %1640 = vmatprep.mubr.bf16.mxu0 0
    %1641 = vmatmul.mubr.bf16.gmra.mxu0 %v1603
    %v1642 = vpop.f32.mrf.mxu0
    %v1643 = vadd.f32 %v1575, %v1642
    %v1644 = vpop.f32.mrf.mxu0
    %v1645 = vpop.f32.mrf.mxu0
    %v1646 = vadd.f32 %v1580, %v1645
    %v1647 = vpop.f32.mrf.mxu0
    %1648 = vmatprep.mubr.bf16.mxu0 0
    %1649 = vmatmul.mubr.bf16.gmra.mxu0 %v1606
    %v1650 = vpop.f32.mrf.mxu0
    %v1651 = vadd.f32 %v1585, %v1650
    %v1652 = vpop.f32.mrf.mxu0
    %v1653 = vpop.f32.mrf.mxu0
    %v1654 = vadd.f32 %v1590, %v1653
    %v1655 = vpop.f32.mrf.mxu0
    %1656 = vdwg.mxu0
    %v1657 = vtanh.pop %v1643
    %v1658 = vtanh.pop %v1646
    %v1659 = vtanh.pop %v1651
    %v1660 = vtanh.pop %v1654
    %v1661 = vpack.c.bf16 %v1658, %v1657
    %v1662 = vpack.c.bf16 %v1660, %v1659
    %s1663 = scalar_lea.vmem %s3, 64
    %v1664 = vld [vmem:[%s1663] sm:$0xf]
    %v1665 = vld [vmem:[%s1663 + $0x4] sm:$0xf]
    %v1666 = vld [vmem:[%s1663 + $0x8] sm:$0xf]
    %v1667 = vld [vmem:[%s1663 + $0xc] sm:$0xf]
    %s1668 = scalar_lea.vmem %s4, 128
    %v1669 = vld [vmem:[%s1668] sm:$0xff]
    %v1670 = vld [vmem:[%s1668 + $0x8] sm:$0xff]
    %v1671 = vld [vmem:[%s1668 + $0x10] sm:$0xff]
    %v1672 = vld [vmem:[%s1668 + $0x18] sm:$0xff]
    %1674 = vset.pattern.permute.xlu0 0
    %1675 = vperm.xlu0 %1674, %v1669
    %v1676 = vpop.permute.xlu0 %1675
    %1679 = vset.pattern.permute.xlu0 0
    %1680 = vperm.xlu0 %1679, %v1670
    %v1681 = vpop.permute.xlu0 %1680
    %1684 = vset.pattern.permute.xlu0 0
    %1685 = vperm.xlu0 %1684, %v1671
    %v1686 = vpop.permute.xlu0 %1685
    %1689 = vset.pattern.permute.xlu0 0
    %1690 = vperm.xlu0 %1689, %v1672
    %v1691 = vpop.permute.xlu0 %1690
    %v1697 = vunpack.c.l.b16 %v1664
    %v1698 = vunpack.c.l.b16 %v1665
    %v1699 = vunpack.c.l.b16 %v1666
    %v1700 = vunpack.c.l.b16 %v1667
    %v1701 = vpack.c.b16 %v1698, %v1697
    %v1702 = vpack.c.b16 %v1700, %v1699
    %v1704 = vsel %vm184, %v1701, 0
    %v1707 = vsel %vm184, %v1702, 0
    %1709 = vmatprep.subr.bf16.mxu0 0
    %1710 = vmatpush1.bf16.msra.mxu0 0
    %1711 = vmatprep.subr.bf16.mxu0 0
    %1712 = vmatpush1.bf16.msra.mxu0 0
    %1713 = vmatprep.subr.bf16.mxu0 0
    %1714 = vmatpush1.bf16.msra.mxu0 0
    %1715 = vmatprep.subr.bf16.mxu0 0
    %1716 = vmatpush1.bf16.msra.mxu0 0
    %1717 = vmatprep.subr.bf16.mxu0 0
    %1718 = vmatpush1.bf16.msra.mxu0 0
    %1719 = vmatprep.subr.bf16.mxu0 0
    %1720 = vmatpush1.bf16.msra.mxu0 0
    %1721 = vmatprep.subr.bf16.mxu0 0
    %1722 = vmatpush1.bf16.msra.mxu0 %v1662
    %1723 = vmatprep.subr.bf16.mxu0 0
    %1724 = vmatpush1.bf16.msra.mxu0 %v1661
    %1725 = vmatprep.subr.bf16.mxu0 0
    %1726 = vmatpush2.bf16.msra.mxu0 0
    %1727 = vmatprep.subr.bf16.mxu0 0
    %1728 = vmatpush2.bf16.msra.mxu0 0
    %1729 = vmatprep.subr.bf16.mxu0 0
    %1730 = vmatpush2.bf16.msra.mxu0 0
    %1731 = vmatprep.subr.bf16.mxu0 0
    %1732 = vmatpush2.bf16.msra.mxu0 0
    %1733 = vmatprep.subr.bf16.mxu0 0
    %1734 = vmatpush2.bf16.msra.mxu0 0
    %1735 = vmatprep.subr.bf16.mxu0 0
    %1736 = vmatpush2.bf16.msra.mxu0 0
    %1737 = vmatprep.subr.bf16.mxu0 0
    %1738 = vmatpush2.bf16.msra.mxu0 0
    %1739 = vmatprep.subr.bf16.mxu0 0
    %1740 = vmatpush2.bf16.msra.mxu0 0
    %1741 = vmatprep.mubr.bf16.mxu0 0
    %1742 = vmatmul.mubr.bf16.gmra.mxu0 %v1704
    %v1743 = vpop.f32.mrf.mxu0
    %v1744 = vadd.f32 %v1676, %v1743
    %v1745 = vpop.f32.mrf.mxu0
    %v1746 = vpop.f32.mrf.mxu0
    %v1747 = vadd.f32 %v1681, %v1746
    %v1748 = vpop.f32.mrf.mxu0
    %1749 = vmatprep.mubr.bf16.mxu0 0
    %1750 = vmatmul.mubr.bf16.gmra.mxu0 %v1707
    %v1751 = vpop.f32.mrf.mxu0
    %v1752 = vadd.f32 %v1686, %v1751
    %v1753 = vpop.f32.mrf.mxu0
    %v1754 = vpop.f32.mrf.mxu0
    %v1755 = vadd.f32 %v1691, %v1754
    %v1756 = vpop.f32.mrf.mxu0
    %1757 = vdwg.mxu0
    %v1758 = vtanh.pop %v1744
    %v1759 = vtanh.pop %v1747
    %v1760 = vtanh.pop %v1752
    %v1761 = vtanh.pop %v1755
    %v1762 = vpack.c.bf16 %v1759, %v1758
    %v1763 = vpack.c.bf16 %v1761, %v1760
    %s1764 = scalar_lea.vmem %s5, 32
    %v1765 = vld [vmem:[%s1764] sm:$0xf]
    %v1766 = vld [vmem:[%s1764 + $0x4] sm:$0xf]
    %s1767 = scalar_lea.vmem %s6, 64
    %v1768 = vld [vmem:[%s1767] sm:$0xff]
    %v1769 = vld [vmem:[%s1767 + $0x8] sm:$0xff]
    %1771 = vset.pattern.permute.xlu0 0
    %1772 = vperm.xlu0 %1771, %v1768
    %v1773 = vpop.permute.xlu0 %1772
    %1776 = vset.pattern.permute.xlu0 0
    %1777 = vperm.xlu0 %1776, %v1769
    %v1778 = vpop.permute.xlu0 %1777
    %v1782 = vunpack.c.l.b16 %v1765
    %v1783 = vunpack.c.l.b16 %v1766
    %v1784 = vpack.c.b16 %v1783, %v1782
    %v1786 = vsel %vm184, %v1784, 0
    %1788 = vmatprep.subr.bf16.mxu0 0
    %1789 = vmatpush1.bf16.msra.mxu0 0
    %1790 = vmatprep.subr.bf16.mxu0 0
    %1791 = vmatpush1.bf16.msra.mxu0 0
    %1792 = vmatprep.subr.bf16.mxu0 0
    %1793 = vmatpush1.bf16.msra.mxu0 0
    %1794 = vmatprep.subr.bf16.mxu0 0
    %1795 = vmatpush1.bf16.msra.mxu0 0
    %1796 = vmatprep.subr.bf16.mxu0 0
    %1797 = vmatpush1.bf16.msra.mxu0 0
    %1798 = vmatprep.subr.bf16.mxu0 0
    %1799 = vmatpush1.bf16.msra.mxu0 0
    %1800 = vmatprep.subr.bf16.mxu0 0
    %1801 = vmatpush1.bf16.msra.mxu0 %v1763
    %1802 = vmatprep.subr.bf16.mxu0 0
    %1803 = vmatpush1.bf16.msra.mxu0 %v1762
    %1804 = vmatprep.subr.bf16.mxu0 0
    %1805 = vmatpush2.bf16.msra.mxu0 0
    %1806 = vmatprep.subr.bf16.mxu0 0
    %1807 = vmatpush2.bf16.msra.mxu0 0
    %1808 = vmatprep.subr.bf16.mxu0 0
    %1809 = vmatpush2.bf16.msra.mxu0 0
    %1810 = vmatprep.subr.bf16.mxu0 0
    %1811 = vmatpush2.bf16.msra.mxu0 0
    %1812 = vmatprep.subr.bf16.mxu0 0
    %1813 = vmatpush2.bf16.msra.mxu0 0
    %1814 = vmatprep.subr.bf16.mxu0 0
    %1815 = vmatpush2.bf16.msra.mxu0 0
    %1816 = vmatprep.subr.bf16.mxu0 0
    %1817 = vmatpush2.bf16.msra.mxu0 0
    %1818 = vmatprep.subr.bf16.mxu0 0
    %1819 = vmatpush2.bf16.msra.mxu0 0
    %1820 = vmatprep.mubr.bf16.mxu0 0
    %1821 = vmatmul.mubr.bf16.gmra.mxu0 %v1786
    %v1822 = vpop.f32.mrf.mxu0
    %v1823 = vadd.f32 %v1773, %v1822
    %v1824 = vpop.f32.mrf.mxu0
    %v1825 = vpop.f32.mrf.mxu0
    %v1826 = vadd.f32 %v1778, %v1825
    %v1827 = vpop.f32.mrf.mxu0
    %1828 = vdwg.mxu0
    %s1829 = scalar_lea.vmem %s7, 32
    %v1830 = vld [vmem:[%s1829] sm:$0xf]
    %v1831 = vld [vmem:[%s1829 + $0x4] sm:$0xf]
    %s1832 = scalar_lea.vmem %s8, 64
    %v1833 = vld [vmem:[%s1832] sm:$0xff]
    %v1834 = vld [vmem:[%s1832 + $0x8] sm:$0xff]
    %1836 = vset.pattern.permute.xlu0 0
    %1837 = vperm.xlu0 %1836, %v1833
    %v1838 = vpop.permute.xlu0 %1837
    %1841 = vset.pattern.permute.xlu0 0
    %1842 = vperm.xlu0 %1841, %v1834
    %v1843 = vpop.permute.xlu0 %1842
    %v1847 = vunpack.c.l.b16 %v1830
    %v1848 = vunpack.c.l.b16 %v1831
    %v1849 = vpack.c.b16 %v1848, %v1847
    %v1851 = vsel %vm184, %v1849, 0
    %1853 = vmatprep.subr.bf16.mxu0 0
    %1854 = vmatpush1.bf16.msra.mxu0 0
    %1855 = vmatprep.subr.bf16.mxu0 0
    %1856 = vmatpush1.bf16.msra.mxu0 0
    %1857 = vmatprep.subr.bf16.mxu0 0
    %1858 = vmatpush1.bf16.msra.mxu0 0
    %1859 = vmatprep.subr.bf16.mxu0 0
    %1860 = vmatpush1.bf16.msra.mxu0 0
    %1861 = vmatprep.subr.bf16.mxu0 0
    %1862 = vmatpush1.bf16.msra.mxu0 0
    %1863 = vmatprep.subr.bf16.mxu0 0
    %1864 = vmatpush1.bf16.msra.mxu0 0
    %1865 = vmatprep.subr.bf16.mxu0 0
    %1866 = vmatpush1.bf16.msra.mxu0 %v1763
    %1867 = vmatprep.subr.bf16.mxu0 0
    %1868 = vmatpush1.bf16.msra.mxu0 %v1762
    %1869 = vmatprep.subr.bf16.mxu0 0
    %1870 = vmatpush2.bf16.msra.mxu0 0
    %1871 = vmatprep.subr.bf16.mxu0 0
    %1872 = vmatpush2.bf16.msra.mxu0 0
    %1873 = vmatprep.subr.bf16.mxu0 0
    %1874 = vmatpush2.bf16.msra.mxu0 0
    %1875 = vmatprep.subr.bf16.mxu0 0
    %1876 = vmatpush2.bf16.msra.mxu0 0
    %1877 = vmatprep.subr.bf16.mxu0 0
    %1878 = vmatpush2.bf16.msra.mxu0 0
    %1879 = vmatprep.subr.bf16.mxu0 0
    %1880 = vmatpush2.bf16.msra.mxu0 0
    %1881 = vmatprep.subr.bf16.mxu0 0
    %1882 = vmatpush2.bf16.msra.mxu0 0
    %1883 = vmatprep.subr.bf16.mxu0 0
    %1884 = vmatpush2.bf16.msra.mxu0 0
    %1885 = vmatprep.mubr.bf16.mxu0 0
    %1886 = vmatmul.mubr.bf16.gmra.mxu0 %v1851
    %v1887 = vpop.f32.mrf.mxu0
    %v1888 = vadd.f32 %v1838, %v1887
    %v1889 = vpop.f32.mrf.mxu0
    %v1890 = vpop.f32.mrf.mxu0
    %v1891 = vadd.f32 %v1843, %v1890
    %v1892 = vpop.f32.mrf.mxu0
    %1893 = vdwg.mxu0
    %v1894 = vsub.f32 %v1559, %v1823
    %v1895 = vsub.f32 %v1560, %v1826
    %v1896 = vsub.f32 0.0, %v1888
    %v1897 = vsub.f32 0.0, %v1891
    %v1898 = vmul.f32 %v1896, 1.442695
    %v1899 = vpow.pop %v1898
    %v1900 = vmul.f32 %v1897, 1.442695
    %v1901 = vpow.pop %v1900
    %v1902 = vmul.f32 %v1894, %v1899
    %v1903 = vmul.f32 %v1895, %v1901
    %v1904 = vadd.f32 %v1888, %v1891
    %v1905 = vrot.slane %v1904, 4
    %v1906 = vadd.f32 %v1904, %v1905
    %v1907 = vrot.slane %v1906, 2
    %v1908 = vadd.f32 %v1906, %v1907
    %v1909 = vrot.slane %v1908, 1
    %v1910 = vadd.f32 %v1908, %v1909
    %v1911 = vsub.f32 %v1530, %v1910
    %s1912 = scalar_lea.vmem %s9, 64
    %v1913 = vld [vmem:[%s1912] sm:$0xff]
    %v1914 = vld [vmem:[%s1912 + $0x8] sm:$0xff]
    %1916 = vset.pattern.permute.xlu0 0
    %1917 = vperm.xlu0 %1916, %v1913
    %v1918 = vpop.permute.xlu0 %1917
    %1921 = vset.pattern.permute.xlu0 0
    %1922 = vperm.xlu0 %1921, %v1914
    %v1923 = vpop.permute.xlu0 %1922
    %v1925 = vmul.f32 %v1902, %v1918
    %v1926 = vmul.f32 %v1903, %v1923
    %s1927 = scalar_lea.vmem %s10, 64
    %v1928 = vld [vmem:[%s1927] sm:$0xff]
    %v1929 = vld [vmem:[%s1927 + $0x8] sm:$0xff]
    %1931 = vset.pattern.permute.xlu0 0
    %1932 = vperm.xlu0 %1931, %v1928
    %v1933 = vpop.permute.xlu0 %1932
    %1936 = vset.pattern.permute.xlu0 0
    %1937 = vperm.xlu0 %1936, %v1929
    %v1938 = vpop.permute.xlu0 %1937
    %v1940 = vadd.f32 %v1925, %v1933
    %v1941 = vadd.f32 %v1926, %v1938
    %1942 = vst [vmem:[#allocation2] sm:$0xff] %v1940
    %1943 = vst [vmem:[#allocation2 + $0x8] sm:$0xff] %v1941
    %1944 = vst [vmem:[#allocation4] sm:$0x1] %v1911
    // Predicated region
    $region46: #{tpu_custom_call.1} parent=1 // pred_check
      _
    $region47: #{tpu_custom_call.1} parent=1 // pred_check_branch
      %1946 = sbr.rel (0) target = $region49
    $region48: #{tpu_custom_call.1} parent=1 // pred_region
      %s1948 = ssub.s32 256, 256
      %1949 = vsyncadd [#allocation3], %s1948
      %s1950 = sshll.u32 [#allocation2], 4
      %s1951 = int_to_ptr.vmem [resolvable:$true] %s1950
      %1956 = dma.vmem_to_hbm [thread:$0]  %s1951, 256, %s11, [#allocation3], 128, 128, 8
    $region49: #{tpu_custom_call.1} parent=1 // pred_fallthru
      _
    // Predicated region
    $region50: #{tpu_custom_call.1} parent=1 // pred_check
      _
    $region51: #{tpu_custom_call.1} parent=1 // pred_check_branch
      %1958 = sbr.rel (0) target = $region53
    $region52: #{tpu_custom_call.1} parent=1 // pred_region
      %s1960 = ssub.s32 16, 16
      %1961 = vsyncadd [#allocation5], %s1960
      %s1963 = sshll.u32 [#allocation4], 4
      %s1964 = int_to_ptr.vmem [resolvable:$true] %s1963
      %1966 = dma.vmem_to_hbm [thread:$0]  %s1964, 16, %s12, [#allocation5]
    $region53: #{tpu_custom_call.1} parent=1 // pred_fallthru
      _
    // Predicated region
    $region54: #{tpu_custom_call.1} parent=1 // pred_check
      _
    $region55: #{tpu_custom_call.1} parent=1 // pred_check_branch
      %1968 = sbr.rel (0) target = $region57
    $region56: #{tpu_custom_call.1} parent=1 // pred_region
      %1969 = dma.done [#allocation3], 256
    $region57: #{tpu_custom_call.1} parent=1 // pred_fallthru
      _
    // Predicated region
    $region58: #{tpu_custom_call.1} parent=1 // pred_check
      _
    $region59: #{tpu_custom_call.1} parent=1 // pred_check_branch
      %1971 = sbr.rel (0) target = $region61
    $region60: #{tpu_custom_call.1} parent=1 // pred_region
      %1972 = dma.done [#allocation5], 16
    $region61: #{tpu_custom_call.1} parent=1 // pred_fallthru
      _
    %1973 = vsyncpa [#allocation3], 1
    %1974 = vsyncpa [#allocation5], 1

</llo_original>
